<compile_context>
chip_gen: v6e
topology: v6e:2x2x1
jax: 0.10.0
libtpu: 0.0.40
codegen_flags: <defaults>
</compile_context>

<pallas_src>
import numpy as np
import jax
import jax.numpy as jnp
from jax import lax
from jax.experimental import pallas as pl
from jax.experimental.pallas import tpu as pltpu

THRESHOLD2 = 12.0 / 255.0   # threshold1 / flat_pixels branch is dead code in the reference

# scipy.signal.gaussian(5, std=1.0) (unnormalized), exactly as the module builds it.
_GAUSS = np.exp(-0.5 * (np.arange(5, dtype=np.float64) - 2.0) ** 2).astype(np.float32)

# Directional 3x3 filters = center(+1) minus one neighbour(-1); (di, dj) of the -1 tap
# (cross-correlation convention, matches nn.Conv2d): filter_0 .. filter_315.
_DIR_OFFSETS = [(0, 1), (1, 1), (1, 0), (1, -1), (0, -1), (-1, -1), (-1, 0), (-1, 1)]

# 4 rows of halo are needed (2 Gaussian + 1 Sobel + 1 directional/median);
# 8 keeps every output slice sublane-aligned.
HALO = 8


def _round_up(x, m):
    return ((x + m - 1) // m) * m


def _recip(x):
    """Reciprocal on the EUP (approx) + one Newton step — keeps divides off the VALU."""
    r = pl.reciprocal(x, approx=True)
    return r * (2.0 - x * r)


def _atan2(y, x):
    """Cephes-style atan2 built from VPU/EUP-friendly ops (mul/add/recip/select)."""
    ax, ay = jnp.abs(x), jnp.abs(y)
    mx, mn = jnp.maximum(ax, ay), jnp.minimum(ax, ay)
    a = mn * _recip(jnp.where(mx == 0.0, 1.0, mx))          # in [0, 1]
    red = a > 0.41421356                                    # tan(pi/8) range reduction
    t = jnp.where(red, (a - 1.0) * _recip(a + 1.0), a)
    z = t * t
    p = ((((8.05374449538e-2 * z - 1.38776856032e-1) * z
           + 1.99777106478e-1) * z - 3.33329491539e-1) * z * t + t)
    r = jnp.where(red, p + 0.7853981633974483, p)
    r = jnp.where(ay > ax, 1.5707963267948966 - r, r)
    r = jnp.where(x < 0.0, 3.141592653589793 - r, r)
    return jnp.where(y < 0.0, -r, r)


def _make_kernel(H, W, TH, R, Wp):
    """H, W: true image size; TH: output rows per tile; R = TH + 2*HALO; Wp: padded width."""
    g0, g1, g2, g3, g4 = (float(v) for v in _GAUSS)

    def kernel(tile_ref, gmat_ref, blur_ref, gmag_ref, gori_ref,
               thin_ref, thr_ref, early_ref, score_ref):
        i = pl.program_id(0)

        col = lax.broadcasted_iota(jnp.int32, (R, Wp), 1)
        row_img = lax.broadcasted_iota(jnp.int32, (R, Wp), 0) + (i * TH - HALO)
        valid = (row_img >= 0) & (row_img < H) & (col < W)
        # column-shift zero masks (true image width W, not the padded Wp)
        mcol = {dj: (col + dj >= 0) & (col + dj < W) for dj in (-2, -1, 1, 2)}

        def rd_col(x, dj):        # x[:, c + dj]  (circular over Wp) — lane roll (XLU)
            return pltpu.roll(x, shift=(-dj) % Wp, axis=1)

        def rd_col0(x, dj):       # zero outside the true [0, W) columns (conv zero-pad)
            return jnp.where(mcol[dj], rd_col(x, dj), 0.0)

        def rd_row(x, di):        # x[r + di, :]  (circular over R) — sublane roll (XLU)
            return pltpu.roll(x, shift=(-di) % R, axis=0)

        rch = tile_ref[0, 0]
        gch = tile_ref[0, 1]
        bch = tile_ref[0, 2]
        # rgb -> YCbCr: only the clipped Y channel feeds the graph (cb/cr are dead).
        img_y = jnp.clip(0.299 * rch + 0.587 * gch + 0.114 * bch, 0.0, 1.0)

        # --- 1x5 horizontal Gaussian (zero padded at the true image columns) ---
        gh = (g2 * img_y
              + g0 * rd_col0(img_y, -2) + g1 * rd_col0(img_y, -1)
              + g3 * rd_col0(img_y, 1) + g4 * rd_col0(img_y, 2))

        # --- 5x1 vertical Gaussian as a constant banded-matrix matmul on the MXU ---
        blurred = jnp.dot(gmat_ref[...], gh, preferred_element_type=jnp.float32)
        blurred = jnp.where(valid, blurred, 0.0)          # zero outside the true image
        blur_ref[...] = blurred[HALO:HALO + TH, :]        # store early (aligned slice)

        # --- Sobel: vertical 3-taps via sublane rolls, horizontal taps via lane rolls ---
        b_up = rd_row(blurred, -1)                        # blurred(r-1, c)
        b_dn = rd_row(blurred, 1)                         # blurred(r+1, c)
        vsm = b_up + 2.0 * blurred + b_dn                 # rows [1, 2, 1]
        vdf = b_up - b_dn                                 # rows [1, 0, -1]
        grad_x = rd_col0(vsm, -1) - rd_col0(vsm, 1)       # cols [1, 0, -1]
        grad_y = rd_col0(vdf, -1) + 2.0 * vdf + rd_col0(vdf, 1)   # cols [1, 2, 1]

        gm = jnp.sqrt(grad_x * grad_x + grad_y * grad_y)
        gm = jnp.where(valid, gm, 0.0)                    # zero outside the true image
        gmag_ref[...] = gm[HALO:HALO + TH, :]             # store early

        # --- orientation quantized to 45-degree bins ---
        theta = _atan2(grad_y, grad_x) * (180.0 / 3.14159) + 180.0
        # NOTE: round-half-up; torch.round is half-to-even, can differ only for angles
        # sitting exactly on a 45-degree bin boundary.
        kq = (theta * (1.0 / 45.0) + 0.5).astype(jnp.int32)          # in 0..8
        gori_ref[...] = (kq.astype(jnp.float32) * 45.0)[HALO:HALO + TH, :]
        idx_pos = kq - 8 * (kq >= 8).astype(jnp.int32)               # kq % 8

        # --- directional NMS; neighbour order follows _DIR_OFFSETS ---
        g_up = rd_row(gm, -1)
        g_dn = rd_row(gm, 1)
        neigh = (
            rd_col0(gm, 1),        # ( 0, +1)
            rd_col0(g_dn, 1),      # (+1, +1)
            g_dn,                  # (+1,  0)
            rd_col0(g_dn, -1),     # (+1, -1)
            rd_col0(gm, -1),       # ( 0, -1)
            rd_col0(g_up, -1),     # (-1, -1)
            g_up,                  # (-1,  0)
            rd_col0(g_up, 1),      # (-1, +1)
        )
        masks = [idx_pos == c for c in range(8)]          # reused for idx_neg = (idx_pos+4)%8
        sel_pos = jnp.zeros_like(gm)
        sel_neg = jnp.zeros_like(gm)
        for c in range(8):
            f_c = gm - neigh[c]
            sel_pos = jnp.where(masks[c], f_c, sel_pos)
            sel_neg = jnp.where(masks[(c + 4) % 8], f_c, sel_neg)
        thin = jnp.where(jnp.minimum(sel_pos, sel_neg) > 0.0, gm, 0.0)

        # --- 3x3 binary median with reflect padding at true borders (== count >= 5) ---
        text = (gm > THRESHOLD2).astype(jnp.float32)
        t_m1 = rd_col(text, -1)                            # text(r, c-1)
        t_p1 = rd_col(text, 1)                             # text(r, c+1)
        left = jnp.where(col == 0, t_p1, t_m1)             # reflect read of c-1
        right = jnp.where(col == W - 1, t_m1, t_p1)        # reflect read of c+1
        hsum = left + text + right
        h_up = rd_row(hsum, -1)
        h_dn = rd_row(hsum, 1)
        above = jnp.where(row_img == 0, h_dn, h_up)        # reflect at true top row
        below = jnp.where(row_img == H - 1, h_up, h_dn)    # reflect at true bottom row
        text_med = ((above + hsum + below) > 4.5).astype(jnp.float32)
        bband = 1.0 - text_med                             # ~text_pixels.bool() as float

        thin_o = thin[HALO:HALO + TH, :]
        bband_o = bband[HALO:HALO + TH, :]
        gm_o = gm[HALO:HALO + TH, :]
        early_o = gm_o * bband_o
        thin_ref[...] = thin_o
        thr_ref[...] = thin_o * bband_o
        early_ref[...] = early_o

        # per-tile partial sum of the banding score (reduced in the wrapper)
        psum = jnp.sum(early_o, axis=(0, 1), keepdims=True)          # (1, 1)
        score_ref[0] = jnp.zeros((8, 128), jnp.float32) + psum

    return kernel


def net_forward(img, tile_rows=128):
    """img: (1, 3, H, W) float32. Returns the 7 outputs of Net.forward()."""
    n, c, h, w = img.shape
    assert n == 1 and c == 3, "reference gather only supports batch 1 RGB input"

    TH = max(8, min(tile_rows, _round_up(h, 8)))   # output rows per tile (sublane aligned)
    nH = -(-h // TH)                               # cdiv
    Hp = nH * TH
    Wp = _round_up(w, 128)                         # lane-dense width
    R = TH + 2 * HALO                              # tile rows incl. halo

    img0 = img[0].astype(jnp.float32)
    # zero padding provides the conv zero-pad rows at the true image borders
    padded = jnp.pad(img0, ((0, 0), (HALO, Hp - h + HALO), (0, Wp - w)))
    # materialize halo'd, non-overlapping row tiles so BlockSpec pipelining applies
    tiles = jnp.stack([padded[:, i * TH:i * TH + R, :] for i in range(nH)], axis=0)

    # constant banded (R, R) matrix implementing the 5x1 vertical Gaussian on the MXU
    d = np.arange(R)[None, :] - np.arange(R)[:, None]
    gmat_np = np.zeros((R, R), np.float32)
    for t in range(5):
        gmat_np[d == (t - 2)] = _GAUSS[t]
    gmat = jnp.asarray(gmat_np)

    kernel = _make_kernel(h, w, TH, R, Wp)
    plane_spec = pl.BlockSpec((TH, Wp), lambda i: (i, 0))
    plane_shape = jax.ShapeDtypeStruct((nH * TH, Wp), jnp.float32)

    outs = pl.pallas_call(
        kernel,
        grid=(nH,),
        in_specs=[
            pl.BlockSpec((1, 3, R, Wp), lambda i: (i, 0, 0, 0)),
            pl.BlockSpec((R, R), lambda i: (0, 0)),     # fetched once (constant index)
        ],
        out_specs=tuple([plane_spec] * 6
                        + [pl.BlockSpec((1, 8, 128), lambda i: (i, 0, 0))]),
        out_shape=tuple([plane_shape] * 6
                        + [jax.ShapeDtypeStruct((nH, 8, 128), jnp.float32)]),
        compiler_params=pltpu.CompilerParams(
            dimension_semantics=("parallel",),
            vmem_limit_bytes=48 * 1024 * 1024,          # under v7x's 64 MiB physical VMEM
        ),
    )(tiles, gmat)

    blurred, gmag, gori, thin, thr, early, score_parts = outs
    crop = lambda a: a[:h, :w].reshape(1, 1, h, w)
    score = (jnp.sum(score_parts[:, 0, 0]) / float(h * w)).reshape(1, 1)
    return (crop(blurred), crop(gmag), crop(gori), crop(thin),
            crop(thr), crop(early), score)


if __name__ == "__main__":
    key = jax.random.PRNGKey(0)
    img = jax.random.uniform(key, (1, 3, 16, 16), dtype=jnp.float32)
    outs = net_forward(img)
    jax.block_until_ready(outs)
    print("KERNEL_OK")
</pallas_src>

<mosaic_0001>
module attributes {stable_mosaic.version = 11 : i64} {
  func.func @kernel(%arg0: i32, %arg1: memref<1x3x32x128xf32, #tpu.memory_space<vmem>>, %arg2: memref<32x32xf32, #tpu.memory_space<vmem>>, %arg3: memref<16x128xf32, #tpu.memory_space<vmem>>, %arg4: memref<16x128xf32, #tpu.memory_space<vmem>>, %arg5: memref<16x128xf32, #tpu.memory_space<vmem>>, %arg6: memref<16x128xf32, #tpu.memory_space<vmem>>, %arg7: memref<16x128xf32, #tpu.memory_space<vmem>>, %arg8: memref<16x128xf32, #tpu.memory_space<vmem>>, %arg9: memref<1x8x128xf32, #tpu.memory_space<vmem>>) attributes {dimension_semantics = [#tpu.dimension_semantics<parallel>], iteration_bounds = array<i64: 1>, scalar_prefetch = 0 : i64, scratch_operands = 0 : i64, tpu.core_type = #tpu.core_type<tc>, window_params = [{transform_indices = @transform_0, window_bounds = array<i64: 1, 3, 32, 128>}, {pipeline_mode = #tpu.pipeline_mode<synchronous>, transform_indices = @transform_1, window_bounds = array<i64: 32, 32>}, {transform_indices = @transform_2, window_bounds = array<i64: 16, 128>}, {transform_indices = @transform_3, window_bounds = array<i64: 16, 128>}, {transform_indices = @transform_4, window_bounds = array<i64: 16, 128>}, {transform_indices = @transform_5, window_bounds = array<i64: 16, 128>}, {transform_indices = @transform_6, window_bounds = array<i64: 16, 128>}, {transform_indices = @transform_7, window_bounds = array<i64: 16, 128>}, {transform_indices = @transform_8, window_bounds = array<i64: 1, 8, 128>}]} {
    %0 = tpu.iota {dimensions = array<i32: 1>} : vector<32x128xi32>
    %1 = tpu.iota {dimensions = array<i32: 0>} : vector<32x128xi32>
    %c16_i32 = arith.constant 16 : i32
    %2 = arith.muli %arg0, %c16_i32 : i32
    %c8_i32 = arith.constant 8 : i32
    %3 = arith.subi %2, %c8_i32 : i32
    %4 = vector.broadcast %3 : i32 to vector<32x128xi32>
    %5 = arith.addi %1, %4 : vector<32x128xi32>
    %c0_i32 = arith.constant 0 : i32
    %6 = vector.broadcast %c0_i32 : i32 to vector<32x128xi32>
    %7 = arith.cmpi sge, %5, %6 : vector<32x128xi32>
    %c16_i32_0 = arith.constant 16 : i32
    %8 = vector.broadcast %c16_i32_0 : i32 to vector<32x128xi32>
    %9 = arith.cmpi slt, %5, %8 : vector<32x128xi32>
    %10 = arith.andi %7, %9 : vector<32x128xi1>
    %c16_i32_1 = arith.constant 16 : i32
    %11 = vector.broadcast %c16_i32_1 : i32 to vector<32x128xi32>
    %12 = arith.cmpi slt, %0, %11 : vector<32x128xi32>
    %13 = arith.andi %10, %12 : vector<32x128xi1>
    %c-2_i32 = arith.constant -2 : i32
    %14 = vector.broadcast %c-2_i32 : i32 to vector<32x128xi32>
    %15 = arith.addi %0, %14 : vector<32x128xi32>
    %c0_i32_2 = arith.constant 0 : i32
    %16 = vector.broadcast %c0_i32_2 : i32 to vector<32x128xi32>
    %17 = arith.cmpi sge, %15, %16 : vector<32x128xi32>
    %c-2_i32_3 = arith.constant -2 : i32
    %18 = vector.broadcast %c-2_i32_3 : i32 to vector<32x128xi32>
    %19 = arith.addi %0, %18 : vector<32x128xi32>
    %c16_i32_4 = arith.constant 16 : i32
    %20 = vector.broadcast %c16_i32_4 : i32 to vector<32x128xi32>
    %21 = arith.cmpi slt, %19, %20 : vector<32x128xi32>
    %22 = arith.andi %17, %21 : vector<32x128xi1>
    %c-1_i32 = arith.constant -1 : i32
    %23 = vector.broadcast %c-1_i32 : i32 to vector<32x128xi32>
    %24 = arith.addi %0, %23 : vector<32x128xi32>
    %c0_i32_5 = arith.constant 0 : i32
    %25 = vector.broadcast %c0_i32_5 : i32 to vector<32x128xi32>
    %26 = arith.cmpi sge, %24, %25 : vector<32x128xi32>
    %c-1_i32_6 = arith.constant -1 : i32
    %27 = vector.broadcast %c-1_i32_6 : i32 to vector<32x128xi32>
    %28 = arith.addi %0, %27 : vector<32x128xi32>
    %c16_i32_7 = arith.constant 16 : i32
    %29 = vector.broadcast %c16_i32_7 : i32 to vector<32x128xi32>
    %30 = arith.cmpi slt, %28, %29 : vector<32x128xi32>
    %31 = arith.andi %26, %30 : vector<32x128xi1>
    %c1_i32 = arith.constant 1 : i32
    %32 = vector.broadcast %c1_i32 : i32 to vector<32x128xi32>
    %33 = arith.addi %0, %32 : vector<32x128xi32>
    %c0_i32_8 = arith.constant 0 : i32
    %34 = vector.broadcast %c0_i32_8 : i32 to vector<32x128xi32>
    %35 = arith.cmpi sge, %33, %34 : vector<32x128xi32>
    %c1_i32_9 = arith.constant 1 : i32
    %36 = vector.broadcast %c1_i32_9 : i32 to vector<32x128xi32>
    %37 = arith.addi %0, %36 : vector<32x128xi32>
    %c16_i32_10 = arith.constant 16 : i32
    %38 = vector.broadcast %c16_i32_10 : i32 to vector<32x128xi32>
    %39 = arith.cmpi slt, %37, %38 : vector<32x128xi32>
    %40 = arith.andi %35, %39 : vector<32x128xi1>
    %c2_i32 = arith.constant 2 : i32
    %41 = vector.broadcast %c2_i32 : i32 to vector<32x128xi32>
    %42 = arith.addi %0, %41 : vector<32x128xi32>
    %c0_i32_11 = arith.constant 0 : i32
    %43 = vector.broadcast %c0_i32_11 : i32 to vector<32x128xi32>
    %44 = arith.cmpi sge, %42, %43 : vector<32x128xi32>
    %c2_i32_12 = arith.constant 2 : i32
    %45 = vector.broadcast %c2_i32_12 : i32 to vector<32x128xi32>
    %46 = arith.addi %0, %45 : vector<32x128xi32>
    %c16_i32_13 = arith.constant 16 : i32
    %47 = vector.broadcast %c16_i32_13 : i32 to vector<32x128xi32>
    %48 = arith.cmpi slt, %46, %47 : vector<32x128xi32>
    %49 = arith.andi %44, %48 : vector<32x128xi1>
    %c0 = arith.constant 0 : index
    %c0_14 = arith.constant 0 : index
    %c0_15 = arith.constant 0 : index
    %c0_16 = arith.constant 0 : index
    %50 = vector.load %arg1[%c0, %c0_14, %c0_15, %c0_16] : memref<1x3x32x128xf32, #tpu.memory_space<vmem>>, vector<1x1x32x128xf32>
    %51 = vector.shape_cast %50 : vector<1x1x32x128xf32> to vector<32x128xf32>
    %c0_17 = arith.constant 0 : index
    %c1 = arith.constant 1 : index
    %c0_18 = arith.constant 0 : index
    %c0_19 = arith.constant 0 : index
    %52 = vector.load %arg1[%c0_17, %c1, %c0_18, %c0_19] : memref<1x3x32x128xf32, #tpu.memory_space<vmem>>, vector<1x1x32x128xf32>
    %53 = vector.shape_cast %52 : vector<1x1x32x128xf32> to vector<32x128xf32>
    %c0_20 = arith.constant 0 : index
    %c2 = arith.constant 2 : index
    %c0_21 = arith.constant 0 : index
    %c0_22 = arith.constant 0 : index
    %54 = vector.load %arg1[%c0_20, %c2, %c0_21, %c0_22] : memref<1x3x32x128xf32, #tpu.memory_space<vmem>>, vector<1x1x32x128xf32>
    %55 = vector.shape_cast %54 : vector<1x1x32x128xf32> to vector<32x128xf32>
    %cst = arith.constant 2.990000e-01 : f32
    %56 = vector.broadcast %cst : f32 to vector<32x128xf32>
    %57 = arith.mulf %56, %51 : vector<32x128xf32>
    %cst_23 = arith.constant 5.870000e-01 : f32
    %58 = vector.broadcast %cst_23 : f32 to vector<32x128xf32>
    %59 = arith.mulf %58, %53 : vector<32x128xf32>
    %60 = arith.addf %57, %59 : vector<32x128xf32>
    %cst_24 = arith.constant 1.140000e-01 : f32
    %61 = vector.broadcast %cst_24 : f32 to vector<32x128xf32>
    %62 = arith.mulf %61, %55 : vector<32x128xf32>
    %63 = arith.addf %60, %62 : vector<32x128xf32>
    %cst_25 = arith.constant 0.000000e+00 : f32
    %cst_26 = arith.constant 1.000000e+00 : f32
    %64 = vector.broadcast %cst_25 : f32 to vector<32x128xf32>
    %65 = arith.maximumf %64, %63 : vector<32x128xf32>
    %66 = vector.broadcast %cst_26 : f32 to vector<32x128xf32>
    %67 = arith.minimumf %66, %65 : vector<32x128xf32>
    %cst_27 = arith.constant 1.000000e+00 : f32
    %68 = vector.broadcast %cst_27 : f32 to vector<32x128xf32>
    %69 = arith.mulf %68, %67 : vector<32x128xf32>
    %c2_i32_28 = arith.constant 2 : i32
    %70 = tpu.dynamic_rotate %67 by %c2_i32_28 dim 1 : vector<32x128xf32>, i32 -> vector<32x128xf32>
    %cst_29 = arith.constant 0.000000e+00 : f32
    %71 = vector.broadcast %cst_29 : f32 to vector<32x128xf32>
    %72 = arith.select %22, %70, %71 : vector<32x128xi1>, vector<32x128xf32>
    %cst_30 = arith.constant 0.135335281 : f32
    %73 = vector.broadcast %cst_30 : f32 to vector<32x128xf32>
    %74 = arith.mulf %73, %72 : vector<32x128xf32>
    %75 = arith.addf %69, %74 : vector<32x128xf32>
    %c1_i32_31 = arith.constant 1 : i32
    %76 = tpu.dynamic_rotate %67 by %c1_i32_31 dim 1 : vector<32x128xf32>, i32 -> vector<32x128xf32>
    %cst_32 = arith.constant 0.000000e+00 : f32
    %77 = vector.broadcast %cst_32 : f32 to vector<32x128xf32>
    %78 = arith.select %31, %76, %77 : vector<32x128xi1>, vector<32x128xf32>
    %cst_33 = arith.constant 0.606530666 : f32
    %79 = vector.broadcast %cst_33 : f32 to vector<32x128xf32>
    %80 = arith.mulf %79, %78 : vector<32x128xf32>
    %81 = arith.addf %75, %80 : vector<32x128xf32>
    %c127_i32 = arith.constant 127 : i32
    %82 = tpu.dynamic_rotate %67 by %c127_i32 dim 1 : vector<32x128xf32>, i32 -> vector<32x128xf32>
    %cst_34 = arith.constant 0.000000e+00 : f32
    %83 = vector.broadcast %cst_34 : f32 to vector<32x128xf32>
    %84 = arith.select %40, %82, %83 : vector<32x128xi1>, vector<32x128xf32>
    %cst_35 = arith.constant 0.606530666 : f32
    %85 = vector.broadcast %cst_35 : f32 to vector<32x128xf32>
    %86 = arith.mulf %85, %84 : vector<32x128xf32>
    %87 = arith.addf %81, %86 : vector<32x128xf32>
    %c126_i32 = arith.constant 126 : i32
    %88 = tpu.dynamic_rotate %67 by %c126_i32 dim 1 : vector<32x128xf32>, i32 -> vector<32x128xf32>
    %cst_36 = arith.constant 0.000000e+00 : f32
    %89 = vector.broadcast %cst_36 : f32 to vector<32x128xf32>
    %90 = arith.select %49, %88, %89 : vector<32x128xi1>, vector<32x128xf32>
    %cst_37 = arith.constant 0.135335281 : f32
    %91 = vector.broadcast %cst_37 : f32 to vector<32x128xf32>
    %92 = arith.mulf %91, %90 : vector<32x128xf32>
    %93 = arith.addf %87, %92 : vector<32x128xf32>
    %c0_38 = arith.constant 0 : index
    %c0_39 = arith.constant 0 : index
    %94 = vector.load %arg2[%c0_38, %c0_39] : memref<32x32xf32, #tpu.memory_space<vmem>>, vector<32x32xf32>
    %cst_40 = arith.constant dense<0.000000e+00> : vector<32x128xf32>
    %95 = tpu.matmul %94, %93, %cst_40 {dimension_numbers = #tpu.dot_dimension_numbers<[1], [0], [0], [1], [0, 0, 1, 1], [], []>} : vector<32x32xf32>, vector<32x128xf32>, vector<32x128xf32> -> vector<32x128xf32>
    %cst_41 = arith.constant 0.000000e+00 : f32
    %96 = vector.broadcast %cst_41 : f32 to vector<32x128xf32>
    %97 = arith.select %13, %95, %96 : vector<32x128xi1>, vector<32x128xf32>
    %98 = vector.extract_strided_slice %97 {offsets = [8, 0], sizes = [16, 128], strides = [1, 1]} : vector<32x128xf32> to vector<16x128xf32>
    %c0_42 = arith.constant 0 : index
    %c0_43 = arith.constant 0 : index
    %99 = vector.load %arg3[%c0_42, %c0_43] : memref<16x128xf32, #tpu.memory_space<vmem>>, vector<16x128xf32>
    tpu.vector_store %arg3[%c0_42, %c0_43], %98 {strides = array<i32>} : memref<16x128xf32, #tpu.memory_space<vmem>>, vector<16x128xf32>,
    %c1_i32_44 = arith.constant 1 : i32
    %100 = tpu.dynamic_rotate %97 by %c1_i32_44 dim 0 : vector<32x128xf32>, i32 -> vector<32x128xf32>
    %c31_i32 = arith.constant 31 : i32
    %101 = tpu.dynamic_rotate %97 by %c31_i32 dim 0 : vector<32x128xf32>, i32 -> vector<32x128xf32>
    %cst_45 = arith.constant 2.000000e+00 : f32
    %102 = vector.broadcast %cst_45 : f32 to vector<32x128xf32>
    %103 = arith.mulf %102, %97 : vector<32x128xf32>
    %104 = arith.addf %100, %103 : vector<32x128xf32>
    %105 = arith.addf %104, %101 : vector<32x128xf32>
    %106 = arith.subf %100, %101 : vector<32x128xf32>
    %c1_i32_46 = arith.constant 1 : i32
    %107 = tpu.dynamic_rotate %105 by %c1_i32_46 dim 1 : vector<32x128xf32>, i32 -> vector<32x128xf32>
    %cst_47 = arith.constant 0.000000e+00 : f32
    %108 = vector.broadcast %cst_47 : f32 to vector<32x128xf32>
    %109 = arith.select %31, %107, %108 : vector<32x128xi1>, vector<32x128xf32>
    %c127_i32_48 = arith.constant 127 : i32
    %110 = tpu.dynamic_rotate %105 by %c127_i32_48 dim 1 : vector<32x128xf32>, i32 -> vector<32x128xf32>
    %cst_49 = arith.constant 0.000000e+00 : f32
    %111 = vector.broadcast %cst_49 : f32 to vector<32x128xf32>
    %112 = arith.select %40, %110, %111 : vector<32x128xi1>, vector<32x128xf32>
    %113 = arith.subf %109, %112 : vector<32x128xf32>
    %c1_i32_50 = arith.constant 1 : i32
    %114 = tpu.dynamic_rotate %106 by %c1_i32_50 dim 1 : vector<32x128xf32>, i32 -> vector<32x128xf32>
    %cst_51 = arith.constant 0.000000e+00 : f32
    %115 = vector.broadcast %cst_51 : f32 to vector<32x128xf32>
    %116 = arith.select %31, %114, %115 : vector<32x128xi1>, vector<32x128xf32>
    %cst_52 = arith.constant 2.000000e+00 : f32
    %117 = vector.broadcast %cst_52 : f32 to vector<32x128xf32>
    %118 = arith.mulf %117, %106 : vector<32x128xf32>
    %119 = arith.addf %116, %118 : vector<32x128xf32>
    %c127_i32_53 = arith.constant 127 : i32
    %120 = tpu.dynamic_rotate %106 by %c127_i32_53 dim 1 : vector<32x128xf32>, i32 -> vector<32x128xf32>
    %cst_54 = arith.constant 0.000000e+00 : f32
    %121 = vector.broadcast %cst_54 : f32 to vector<32x128xf32>
    %122 = arith.select %40, %120, %121 : vector<32x128xi1>, vector<32x128xf32>
    %123 = arith.addf %119, %122 : vector<32x128xf32>
    %124 = arith.mulf %113, %113 : vector<32x128xf32>
    %125 = arith.mulf %123, %123 : vector<32x128xf32>
    %126 = arith.addf %124, %125 : vector<32x128xf32>
    %127 = math.sqrt %126 : vector<32x128xf32>
    %cst_55 = arith.constant 0.000000e+00 : f32
    %128 = vector.broadcast %cst_55 : f32 to vector<32x128xf32>
    %129 = arith.select %13, %127, %128 : vector<32x128xi1>, vector<32x128xf32>
    %130 = vector.extract_strided_slice %129 {offsets = [8, 0], sizes = [16, 128], strides = [1, 1]} : vector<32x128xf32> to vector<16x128xf32>
    %c0_56 = arith.constant 0 : index
    %c0_57 = arith.constant 0 : index
    %131 = vector.load %arg4[%c0_56, %c0_57] : memref<16x128xf32, #tpu.memory_space<vmem>>, vector<16x128xf32>
    tpu.vector_store %arg4[%c0_56, %c0_57], %130 {strides = array<i32>} : memref<16x128xf32, #tpu.memory_space<vmem>>, vector<16x128xf32>,
    %132 = math.absf %113 : vector<32x128xf32>
    %133 = math.absf %123 : vector<32x128xf32>
    %134 = arith.maximumf %132, %133 : vector<32x128xf32>
    %135 = arith.minimumf %132, %133 : vector<32x128xf32>
    %cst_58 = arith.constant 0.000000e+00 : f32
    %136 = vector.broadcast %cst_58 : f32 to vector<32x128xf32>
    %137 = arith.cmpf oeq, %134, %136 : vector<32x128xf32>
    %cst_59 = arith.constant 1.000000e+00 : f32
    %138 = vector.broadcast %cst_59 : f32 to vector<32x128xf32>
    %139 = arith.select %137, %138, %134 : vector<32x128xi1>, vector<32x128xf32>
    %140 = tpu.reciprocal %139 {approx = true} : vector<32x128xf32> -> vector<32x128xf32>
    %141 = arith.mulf %139, %140 : vector<32x128xf32>
    %cst_60 = arith.constant 2.000000e+00 : f32
    %142 = vector.broadcast %cst_60 : f32 to vector<32x128xf32>
    %143 = arith.subf %142, %141 : vector<32x128xf32>
    %144 = arith.mulf %140, %143 : vector<32x128xf32>
    %145 = arith.mulf %135, %144 : vector<32x128xf32>
    %cst_61 = arith.constant 0.414213568 : f32
    %146 = vector.broadcast %cst_61 : f32 to vector<32x128xf32>
    %147 = arith.cmpf ogt, %145, %146 : vector<32x128xf32>
    %cst_62 = arith.constant 1.000000e+00 : f32
    %148 = vector.broadcast %cst_62 : f32 to vector<32x128xf32>
    %149 = arith.subf %145, %148 : vector<32x128xf32>
    %cst_63 = arith.constant 1.000000e+00 : f32
    %150 = vector.broadcast %cst_63 : f32 to vector<32x128xf32>
    %151 = arith.addf %145, %150 : vector<32x128xf32>
    %152 = tpu.reciprocal %151 {approx = true} : vector<32x128xf32> -> vector<32x128xf32>
    %153 = arith.mulf %151, %152 : vector<32x128xf32>
    %cst_64 = arith.constant 2.000000e+00 : f32
    %154 = vector.broadcast %cst_64 : f32 to vector<32x128xf32>
    %155 = arith.subf %154, %153 : vector<32x128xf32>
    %156 = arith.mulf %152, %155 : vector<32x128xf32>
    %157 = arith.mulf %149, %156 : vector<32x128xf32>
    %158 = arith.select %147, %157, %145 : vector<32x128xi1>, vector<32x128xf32>
    %159 = arith.mulf %158, %158 : vector<32x128xf32>
    %cst_65 = arith.constant 0.0805374458 : f32
    %160 = vector.broadcast %cst_65 : f32 to vector<32x128xf32>
    %161 = arith.mulf %160, %159 : vector<32x128xf32>
    %cst_66 = arith.constant 0.138776854 : f32
    %162 = vector.broadcast %cst_66 : f32 to vector<32x128xf32>
    %163 = arith.subf %161, %162 : vector<32x128xf32>
    %164 = arith.mulf %163, %159 : vector<32x128xf32>
    %cst_67 = arith.constant 0.199777111 : f32
    %165 = vector.broadcast %cst_67 : f32 to vector<32x128xf32>
    %166 = arith.addf %164, %165 : vector<32x128xf32>
    %167 = arith.mulf %166, %159 : vector<32x128xf32>
    %cst_68 = arith.constant 0.333329499 : f32
    %168 = vector.broadcast %cst_68 : f32 to vector<32x128xf32>
    %169 = arith.subf %167, %168 : vector<32x128xf32>
    %170 = arith.mulf %169, %159 : vector<32x128xf32>
    %171 = arith.mulf %170, %158 : vector<32x128xf32>
    %172 = arith.addf %171, %158 : vector<32x128xf32>
    %cst_69 = arith.constant 0.785398185 : f32
    %173 = vector.broadcast %cst_69 : f32 to vector<32x128xf32>
    %174 = arith.addf %172, %173 : vector<32x128xf32>
    %175 = arith.select %147, %174, %172 : vector<32x128xi1>, vector<32x128xf32>
    %176 = arith.cmpf ogt, %133, %132 : vector<32x128xf32>
    %cst_70 = arith.constant 1.57079637 : f32
    %177 = vector.broadcast %cst_70 : f32 to vector<32x128xf32>
    %178 = arith.subf %177, %175 : vector<32x128xf32>
    %179 = arith.select %176, %178, %175 : vector<32x128xi1>, vector<32x128xf32>
    %cst_71 = arith.constant 0.000000e+00 : f32
    %180 = vector.broadcast %cst_71 : f32 to vector<32x128xf32>
    %181 = arith.cmpf olt, %113, %180 : vector<32x128xf32>
    %cst_72 = arith.constant 3.14159274 : f32
    %182 = vector.broadcast %cst_72 : f32 to vector<32x128xf32>
    %183 = arith.subf %182, %179 : vector<32x128xf32>
    %184 = arith.select %181, %183, %179 : vector<32x128xi1>, vector<32x128xf32>
    %cst_73 = arith.constant 0.000000e+00 : f32
    %185 = vector.broadcast %cst_73 : f32 to vector<32x128xf32>
    %186 = arith.cmpf olt, %123, %185 : vector<32x128xf32>
    %cst_74 = arith.constant 0.000000e+00 : f32
    %187 = vector.broadcast %cst_74 : f32 to vector<32x128xf32>
    %188 = arith.subf %187, %184 : vector<32x128xf32>
    %189 = arith.select %186, %188, %184 : vector<32x128xi1>, vector<32x128xf32>
    %cst_75 = arith.constant 57.2958298 : f32
    %190 = vector.broadcast %cst_75 : f32 to vector<32x128xf32>
    %191 = arith.mulf %189, %190 : vector<32x128xf32>
    %cst_76 = arith.constant 1.800000e+02 : f32
    %192 = vector.broadcast %cst_76 : f32 to vector<32x128xf32>
    %193 = arith.addf %191, %192 : vector<32x128xf32>
    %cst_77 = arith.constant 0.0222222228 : f32
    %194 = vector.broadcast %cst_77 : f32 to vector<32x128xf32>
    %195 = arith.mulf %193, %194 : vector<32x128xf32>
    %cst_78 = arith.constant 5.000000e-01 : f32
    %196 = vector.broadcast %cst_78 : f32 to vector<32x128xf32>
    %197 = arith.addf %195, %196 : vector<32x128xf32>
    %198 = arith.fptosi %197 : vector<32x128xf32> to vector<32x128xi32>
    %199 = arith.sitofp %198 : vector<32x128xi32> to vector<32x128xf32>
    %cst_79 = arith.constant 4.500000e+01 : f32
    %200 = vector.broadcast %cst_79 : f32 to vector<32x128xf32>
    %201 = arith.mulf %199, %200 : vector<32x128xf32>
    %202 = vector.extract_strided_slice %201 {offsets = [8, 0], sizes = [16, 128], strides = [1, 1]} : vector<32x128xf32> to vector<16x128xf32>
    %c0_80 = arith.constant 0 : index
    %c0_81 = arith.constant 0 : index
    %203 = vector.load %arg5[%c0_80, %c0_81] : memref<16x128xf32, #tpu.memory_space<vmem>>, vector<16x128xf32>
    tpu.vector_store %arg5[%c0_80, %c0_81], %202 {strides = array<i32>} : memref<16x128xf32, #tpu.memory_space<vmem>>, vector<16x128xf32>,
    %c8_i32_82 = arith.constant 8 : i32
    %204 = vector.broadcast %c8_i32_82 : i32 to vector<32x128xi32>
    %205 = arith.cmpi sge, %198, %204 : vector<32x128xi32>
    %206 = arith.extui %205 : vector<32x128xi1> to vector<32x128xi32>
    %c8_i32_83 = arith.constant 8 : i32
    %207 = vector.broadcast %c8_i32_83 : i32 to vector<32x128xi32>
    %208 = arith.muli %207, %206 : vector<32x128xi32>
    %209 = arith.subi %198, %208 : vector<32x128xi32>
    %c1_i32_84 = arith.constant 1 : i32
    %210 = tpu.dynamic_rotate %129 by %c1_i32_84 dim 0 : vector<32x128xf32>, i32 -> vector<32x128xf32>
    %c31_i32_85 = arith.constant 31 : i32
    %211 = tpu.dynamic_rotate %129 by %c31_i32_85 dim 0 : vector<32x128xf32>, i32 -> vector<32x128xf32>
    %c127_i32_86 = arith.constant 127 : i32
    %212 = tpu.dynamic_rotate %129 by %c127_i32_86 dim 1 : vector<32x128xf32>, i32 -> vector<32x128xf32>
    %cst_87 = arith.constant 0.000000e+00 : f32
    %213 = vector.broadcast %cst_87 : f32 to vector<32x128xf32>
    %214 = arith.select %40, %212, %213 : vector<32x128xi1>, vector<32x128xf32>
    %c127_i32_88 = arith.constant 127 : i32
    %215 = tpu.dynamic_rotate %211 by %c127_i32_88 dim 1 : vector<32x128xf32>, i32 -> vector<32x128xf32>
    %cst_89 = arith.constant 0.000000e+00 : f32
    %216 = vector.broadcast %cst_89 : f32 to vector<32x128xf32>
    %217 = arith.select %40, %215, %216 : vector<32x128xi1>, vector<32x128xf32>
    %c1_i32_90 = arith.constant 1 : i32
    %218 = tpu.dynamic_rotate %211 by %c1_i32_90 dim 1 : vector<32x128xf32>, i32 -> vector<32x128xf32>
    %cst_91 = arith.constant 0.000000e+00 : f32
    %219 = vector.broadcast %cst_91 : f32 to vector<32x128xf32>
    %220 = arith.select %31, %218, %219 : vector<32x128xi1>, vector<32x128xf32>
    %c1_i32_92 = arith.constant 1 : i32
    %221 = tpu.dynamic_rotate %129 by %c1_i32_92 dim 1 : vector<32x128xf32>, i32 -> vector<32x128xf32>
    %cst_93 = arith.constant 0.000000e+00 : f32
    %222 = vector.broadcast %cst_93 : f32 to vector<32x128xf32>
    %223 = arith.select %31, %221, %222 : vector<32x128xi1>, vector<32x128xf32>
    %c1_i32_94 = arith.constant 1 : i32
    %224 = tpu.dynamic_rotate %210 by %c1_i32_94 dim 1 : vector<32x128xf32>, i32 -> vector<32x128xf32>
    %cst_95 = arith.constant 0.000000e+00 : f32
    %225 = vector.broadcast %cst_95 : f32 to vector<32x128xf32>
    %226 = arith.select %31, %224, %225 : vector<32x128xi1>, vector<32x128xf32>
    %c127_i32_96 = arith.constant 127 : i32
    %227 = tpu.dynamic_rotate %210 by %c127_i32_96 dim 1 : vector<32x128xf32>, i32 -> vector<32x128xf32>
    %cst_97 = arith.constant 0.000000e+00 : f32
    %228 = vector.broadcast %cst_97 : f32 to vector<32x128xf32>
    %229 = arith.select %40, %227, %228 : vector<32x128xi1>, vector<32x128xf32>
    %c0_i32_98 = arith.constant 0 : i32
    %230 = vector.broadcast %c0_i32_98 : i32 to vector<32x128xi32>
    %231 = arith.cmpi eq, %209, %230 : vector<32x128xi32>
    %c1_i32_99 = arith.constant 1 : i32
    %232 = vector.broadcast %c1_i32_99 : i32 to vector<32x128xi32>
    %233 = arith.cmpi eq, %209, %232 : vector<32x128xi32>
    %c2_i32_100 = arith.constant 2 : i32
    %234 = vector.broadcast %c2_i32_100 : i32 to vector<32x128xi32>
    %235 = arith.cmpi eq, %209, %234 : vector<32x128xi32>
    %c3_i32 = arith.constant 3 : i32
    %236 = vector.broadcast %c3_i32 : i32 to vector<32x128xi32>
    %237 = arith.cmpi eq, %209, %236 : vector<32x128xi32>
    %c4_i32 = arith.constant 4 : i32
    %238 = vector.broadcast %c4_i32 : i32 to vector<32x128xi32>
    %239 = arith.cmpi eq, %209, %238 : vector<32x128xi32>
    %c5_i32 = arith.constant 5 : i32
    %240 = vector.broadcast %c5_i32 : i32 to vector<32x128xi32>
    %241 = arith.cmpi eq, %209, %240 : vector<32x128xi32>
    %c6_i32 = arith.constant 6 : i32
    %242 = vector.broadcast %c6_i32 : i32 to vector<32x128xi32>
    %243 = arith.cmpi eq, %209, %242 : vector<32x128xi32>
    %c7_i32 = arith.constant 7 : i32
    %244 = vector.broadcast %c7_i32 : i32 to vector<32x128xi32>
    %245 = arith.cmpi eq, %209, %244 : vector<32x128xi32>
    %cst_101 = arith.constant 0.000000e+00 : f32
    %246 = vector.broadcast %cst_101 : f32 to vector<32x128xf32>
    %cst_102 = arith.constant 0.000000e+00 : f32
    %247 = vector.broadcast %cst_102 : f32 to vector<32x128xf32>
    %248 = arith.subf %129, %214 : vector<32x128xf32>
    %249 = arith.select %231, %248, %246 : vector<32x128xi1>, vector<32x128xf32>
    %250 = arith.select %239, %248, %247 : vector<32x128xi1>, vector<32x128xf32>
    %251 = arith.subf %129, %217 : vector<32x128xf32>
    %252 = arith.select %233, %251, %249 : vector<32x128xi1>, vector<32x128xf32>
    %253 = arith.select %241, %251, %250 : vector<32x128xi1>, vector<32x128xf32>
    %254 = arith.subf %129, %211 : vector<32x128xf32>
    %255 = arith.select %235, %254, %252 : vector<32x128xi1>, vector<32x128xf32>
    %256 = arith.select %243, %254, %253 : vector<32x128xi1>, vector<32x128xf32>
    %257 = arith.subf %129, %220 : vector<32x128xf32>
    %258 = arith.select %237, %257, %255 : vector<32x128xi1>, vector<32x128xf32>
    %259 = arith.select %245, %257, %256 : vector<32x128xi1>, vector<32x128xf32>
    %260 = arith.subf %129, %223 : vector<32x128xf32>
    %261 = arith.select %239, %260, %258 : vector<32x128xi1>, vector<32x128xf32>
    %262 = arith.select %231, %260, %259 : vector<32x128xi1>, vector<32x128xf32>
    %263 = arith.subf %129, %226 : vector<32x128xf32>
    %264 = arith.select %241, %263, %261 : vector<32x128xi1>, vector<32x128xf32>
    %265 = arith.select %233, %263, %262 : vector<32x128xi1>, vector<32x128xf32>
    %266 = arith.subf %129, %210 : vector<32x128xf32>
    %267 = arith.select %243, %266, %264 : vector<32x128xi1>, vector<32x128xf32>
    %268 = arith.select %235, %266, %265 : vector<32x128xi1>, vector<32x128xf32>
    %269 = arith.subf %129, %229 : vector<32x128xf32>
    %270 = arith.select %245, %269, %267 : vector<32x128xi1>, vector<32x128xf32>
    %271 = arith.select %237, %269, %268 : vector<32x128xi1>, vector<32x128xf32>
    %272 = arith.minimumf %270, %271 : vector<32x128xf32>
    %cst_103 = arith.constant 0.000000e+00 : f32
    %273 = vector.broadcast %cst_103 : f32 to vector<32x128xf32>
    %274 = arith.cmpf ogt, %272, %273 : vector<32x128xf32>
    %cst_104 = arith.constant 0.000000e+00 : f32
    %275 = vector.broadcast %cst_104 : f32 to vector<32x128xf32>
    %276 = arith.select %274, %129, %275 : vector<32x128xi1>, vector<32x128xf32>
    %cst_105 = arith.constant 0.0470588244 : f32
    %277 = vector.broadcast %cst_105 : f32 to vector<32x128xf32>
    %278 = arith.cmpf ogt, %129, %277 : vector<32x128xf32>
    %279 = arith.extui %278 : vector<32x128xi1> to vector<32x128xi32>
    %280 = arith.sitofp %279 : vector<32x128xi32> to vector<32x128xf32>
    %c1_i32_106 = arith.constant 1 : i32
    %281 = tpu.dynamic_rotate %280 by %c1_i32_106 dim 1 : vector<32x128xf32>, i32 -> vector<32x128xf32>
    %c127_i32_107 = arith.constant 127 : i32
    %282 = tpu.dynamic_rotate %280 by %c127_i32_107 dim 1 : vector<32x128xf32>, i32 -> vector<32x128xf32>
    %c0_i32_108 = arith.constant 0 : i32
    %283 = vector.broadcast %c0_i32_108 : i32 to vector<32x128xi32>
    %284 = arith.cmpi eq, %0, %283 : vector<32x128xi32>
    %285 = arith.select %284, %282, %281 : vector<32x128xi1>, vector<32x128xf32>
    %c15_i32 = arith.constant 15 : i32
    %286 = vector.broadcast %c15_i32 : i32 to vector<32x128xi32>
    %287 = arith.cmpi eq, %0, %286 : vector<32x128xi32>
    %288 = arith.select %287, %281, %282 : vector<32x128xi1>, vector<32x128xf32>
    %289 = arith.addf %285, %280 : vector<32x128xf32>
    %290 = arith.addf %289, %288 : vector<32x128xf32>
    %c1_i32_109 = arith.constant 1 : i32
    %291 = tpu.dynamic_rotate %290 by %c1_i32_109 dim 0 : vector<32x128xf32>, i32 -> vector<32x128xf32>
    %c31_i32_110 = arith.constant 31 : i32
    %292 = tpu.dynamic_rotate %290 by %c31_i32_110 dim 0 : vector<32x128xf32>, i32 -> vector<32x128xf32>
    %c0_i32_111 = arith.constant 0 : i32
    %293 = vector.broadcast %c0_i32_111 : i32 to vector<32x128xi32>
    %294 = arith.cmpi eq, %5, %293 : vector<32x128xi32>
    %295 = arith.select %294, %292, %291 : vector<32x128xi1>, vector<32x128xf32>
    %c15_i32_112 = arith.constant 15 : i32
    %296 = vector.broadcast %c15_i32_112 : i32 to vector<32x128xi32>
    %297 = arith.cmpi eq, %5, %296 : vector<32x128xi32>
    %298 = arith.select %297, %291, %292 : vector<32x128xi1>, vector<32x128xf32>
    %299 = arith.addf %295, %290 : vector<32x128xf32>
    %300 = arith.addf %299, %298 : vector<32x128xf32>
    %cst_113 = arith.constant 4.500000e+00 : f32
    %301 = vector.broadcast %cst_113 : f32 to vector<32x128xf32>
    %302 = arith.cmpf ogt, %300, %301 : vector<32x128xf32>
    %303 = arith.extui %302 : vector<32x128xi1> to vector<32x128xi32>
    %304 = arith.sitofp %303 : vector<32x128xi32> to vector<32x128xf32>
    %cst_114 = arith.constant 1.000000e+00 : f32
    %305 = vector.broadcast %cst_114 : f32 to vector<32x128xf32>
    %306 = arith.subf %305, %304 : vector<32x128xf32>
    %307 = vector.extract_strided_slice %276 {offsets = [8, 0], sizes = [16, 128], strides = [1, 1]} : vector<32x128xf32> to vector<16x128xf32>
    %308 = vector.extract_strided_slice %306 {offsets = [8, 0], sizes = [16, 128], strides = [1, 1]} : vector<32x128xf32> to vector<16x128xf32>
    %309 = vector.extract_strided_slice %129 {offsets = [8, 0], sizes = [16, 128], strides = [1, 1]} : vector<32x128xf32> to vector<16x128xf32>
    %310 = arith.mulf %309, %308 : vector<16x128xf32>
    %c0_115 = arith.constant 0 : index
    %c0_116 = arith.constant 0 : index
    %311 = vector.load %arg6[%c0_115, %c0_116] : memref<16x128xf32, #tpu.memory_space<vmem>>, vector<16x128xf32>
    tpu.vector_store %arg6[%c0_115, %c0_116], %307 {strides = array<i32>} : memref<16x128xf32, #tpu.memory_space<vmem>>, vector<16x128xf32>,
    %312 = arith.mulf %307, %308 : vector<16x128xf32>
    %c0_117 = arith.constant 0 : index
    %c0_118 = arith.constant 0 : index
    %313 = vector.load %arg7[%c0_117, %c0_118] : memref<16x128xf32, #tpu.memory_space<vmem>>, vector<16x128xf32>
    tpu.vector_store %arg7[%c0_117, %c0_118], %312 {strides = array<i32>} : memref<16x128xf32, #tpu.memory_space<vmem>>, vector<16x128xf32>,
    %c0_119 = arith.constant 0 : index
    %c0_120 = arith.constant 0 : index
    %314 = vector.load %arg8[%c0_119, %c0_120] : memref<16x128xf32, #tpu.memory_space<vmem>>, vector<16x128xf32>
    tpu.vector_store %arg8[%c0_119, %c0_120], %310 {strides = array<i32>} : memref<16x128xf32, #tpu.memory_space<vmem>>, vector<16x128xf32>,
    %315 = vector.shape_cast %310 : vector<16x128xf32> to vector<1x16x128xf32>
    %cst_121 = arith.constant dense<0.000000e+00> : vector<1xf32>
    %316 = vector.multi_reduction <add>, %315, %cst_121 [1, 2] : vector<1x16x128xf32> to vector<1xf32>
    %317 = vector.shape_cast %316 : vector<1xf32> to vector<1x1x1xf32>
    %318 = vector.extract %317[0, 0, 0] : f32 from vector<1x1x1xf32>
    %319 = vector.broadcast %318 : f32 to vector<1x1xf32>
    %cst_122 = arith.constant 0.000000e+00 : f32
    %320 = vector.broadcast %cst_122 : f32 to vector<8x128xf32>
    %321 = vector.broadcast %319 : vector<1x1xf32> to vector<8x128xf32>
    %322 = arith.addf %320, %321 : vector<8x128xf32>
    %c0_123 = arith.constant 0 : index
    %c0_124 = arith.constant 0 : index
    %c0_125 = arith.constant 0 : index
    %323 = vector.load %arg9[%c0_123, %c0_124, %c0_125] : memref<1x8x128xf32, #tpu.memory_space<vmem>>, vector<1x8x128xf32>
    %324 = vector.shape_cast %323 : vector<1x8x128xf32> to vector<8x128xf32>
    %325 = vector.shape_cast %322 : vector<8x128xf32> to vector<1x8x128xf32>
    tpu.vector_store %arg9[%c0_123, %c0_124, %c0_125], %325 {strides = array<i32>} : memref<1x8x128xf32, #tpu.memory_space<vmem>>, vector<1x8x128xf32>,
    return
  }
  func.func @transform_0(%arg0: i32) -> (i32, i32, i32, i32) {
    %c0_i32 = arith.constant 0 : i32
    %c0_i32_0 = arith.constant 0 : i32
    %c0_i32_1 = arith.constant 0 : i32
    %c0_i32_2 = arith.constant 0 : i32
    return %arg0, %c0_i32, %c0_i32_0, %c0_i32_1 : i32, i32, i32, i32
  }
  func.func @transform_1(%arg0: i32) -> (i32, i32) {
    %c0_i32 = arith.constant 0 : i32
    %c0_i32_0 = arith.constant 0 : i32
    %c0_i32_1 = arith.constant 0 : i32
    return %c0_i32, %c0_i32_0 : i32, i32
  }
  func.func @transform_2(%arg0: i32) -> (i32, i32) {
    %c0_i32 = arith.constant 0 : i32
    %c0_i32_0 = arith.constant 0 : i32
    return %arg0, %c0_i32 : i32, i32
  }
  func.func @transform_3(%arg0: i32) -> (i32, i32) {
    %c0_i32 = arith.constant 0 : i32
    %c0_i32_0 = arith.constant 0 : i32
    return %arg0, %c0_i32 : i32, i32
  }
  func.func @transform_4(%arg0: i32) -> (i32, i32) {
    %c0_i32 = arith.constant 0 : i32
    %c0_i32_0 = arith.constant 0 : i32
    return %arg0, %c0_i32 : i32, i32
  }
  func.func @transform_5(%arg0: i32) -> (i32, i32) {
    %c0_i32 = arith.constant 0 : i32
    %c0_i32_0 = arith.constant 0 : i32
    return %arg0, %c0_i32 : i32, i32
  }
  func.func @transform_6(%arg0: i32) -> (i32, i32) {
    %c0_i32 = arith.constant 0 : i32
    %c0_i32_0 = arith.constant 0 : i32
    return %arg0, %c0_i32 : i32, i32
  }
  func.func @transform_7(%arg0: i32) -> (i32, i32) {
    %c0_i32 = arith.constant 0 : i32
    %c0_i32_0 = arith.constant 0 : i32
    return %arg0, %c0_i32 : i32, i32
  }
  func.func @transform_8(%arg0: i32) -> (i32, i32, i32) {
    %c0_i32 = arith.constant 0 : i32
    %c0_i32_0 = arith.constant 0 : i32
    %c0_i32_1 = arith.constant 0 : i32
    return %arg0, %c0_i32, %c0_i32_0 : i32, i32, i32
  }
}

</mosaic_0001>

<llo_original>
// kernel: tpu_custom_call.1
$region0: #{tpu_custom_call.1}
  #allocation0 [shape = 'u32[]', space=smem, size = 0x4, offset = 0x4, fixed_abs, tag = 'smem constant byte address 0x4 - core index']
  #allocation1 [shape = 'u32[144,128]{1,0:T(1,128)}', space=vmem, size = 0x12000, scoped, tag = 'internal scratch']
  %s0 = inlined_call_operand.hbm [shape: f32[1,3,32,128], index: 0, kind: input, shape index: {}]
  %s1 = inlined_call_operand.hbm [shape: f32[32,32], index: 1, kind: input, shape index: {}]
  %s2 = inlined_call_operand.hbm [shape: f32[16,128], index: 2, kind: output, shape index: {0}]
  %s3 = inlined_call_operand.hbm [shape: f32[16,128], index: 3, kind: output, shape index: {1}]
  %s4 = inlined_call_operand.hbm [shape: f32[16,128], index: 4, kind: output, shape index: {2}]
  %s5 = inlined_call_operand.hbm [shape: f32[16,128], index: 5, kind: output, shape index: {3}]
  %s6 = inlined_call_operand.hbm [shape: f32[16,128], index: 6, kind: output, shape index: {4}]
  %s7 = inlined_call_operand.hbm [shape: f32[16,128], index: 7, kind: output, shape index: {5}]
  %s8 = inlined_call_operand.hbm [shape: f32[1,8,128], index: 8, kind: output, shape index: {6}]
  %9 = xla_tuple %s2, %s3, %s4, %s5, %s6, %s7, %s8
  %s10 = sld [smem:[#allocation0]]
  $region74: #{tpu_custom_call.1} parent=0
    _
  %s12 = ssub.s32 1, %s10
  %s13 = scalar_select 0, %s12, %s10
  $region1: #{tpu_custom_call.1} parent=0
    #allocation2 [shape = 'u8[49152]{0}', space=vmem, size = 0xc000, scoped, tag = 'input window, operand 0, single buffered']
    #allocation3 [shape = 's32[1]{0}', space=sflag, size = 0x4, scoped, tag = 'scoped memory for tpu_custom_call.1']
    #allocation4 [shape = 's32[1]{0}', space=sflag, size = 0x4, scoped, tag = 'scoped memory for tpu_custom_call.1']
    #allocation5 [shape = 'u8[16384]{0}', space=vmem, size = 0x4000, scoped, tag = 'input window, operand 1, single buffered']
    #allocation6 [shape = 's32[1]{0}', space=sflag, size = 0x4, scoped, tag = 'scoped memory for tpu_custom_call.1']
    #allocation7 [shape = 'u8[8192]{0}', space=vmem, size = 0x2000, scoped, tag = 'output window, operand 0, single buffered']
    #allocation8 [shape = 'u8[8192]{0}', space=vmem, size = 0x2000, scoped, tag = 'output window, operand 1, single buffered']
    #allocation9 [shape = 's32[1]{0}', space=sflag, size = 0x4, scoped, tag = 'scoped memory for tpu_custom_call.1']
    #allocation10 [shape = 'u8[8192]{0}', space=vmem, size = 0x2000, scoped, tag = 'output window, operand 2, single buffered']
    #allocation11 [shape = 'u8[8192]{0}', space=vmem, size = 0x2000, scoped, tag = 'output window, operand 3, single buffered']
    #allocation12 [shape = 's32[1]{0}', space=sflag, size = 0x4, scoped, tag = 'scoped memory for tpu_custom_call.1']
    #allocation13 [shape = 'u8[8192]{0}', space=vmem, size = 0x2000, scoped, tag = 'output window, operand 4, single buffered']
    #allocation14 [shape = 'u8[8192]{0}', space=vmem, size = 0x2000, scoped, tag = 'output window, operand 5, single buffered']
    #allocation15 [shape = 's32[1]{0}', space=sflag, size = 0x4, scoped, tag = 'scoped memory for tpu_custom_call.1']
    #allocation16 [shape = 'u8[4096]{0}', space=vmem, size = 0x1000, scoped, tag = 'output window, operand 6, single buffered']
    %14 = vsyncpa [#allocation3], 0
    %15 = vsyncpa [#allocation6], 0
    %16 = vsyncpa [#allocation4], 0
    %17 = vsyncpa [#allocation9], 0
    %18 = vsyncpa [#allocation12], 0
    %19 = vsyncpa [#allocation15], 0
    // Predicated region
    $region2: #{tpu_custom_call.1} parent=1 // pred_check
      _
    $region3: #{tpu_custom_call.1} parent=1 // pred_check_branch
      %21 = sbr.rel (0) target = $region5
    $region4: #{tpu_custom_call.1} parent=1 // pred_region
      %s23 = ssub.s32 1536, 1536
      %24 = vsyncadd [#allocation3], %s23
      %s25 = sshll.u32 [#allocation2], 4
      %s26 = int_to_ptr.vmem [resolvable:$true] %s25
      %31 = dma.hbm_to_vmem [thread:$0]  %s0, 1536, %s26, [#allocation3], 128, 128, 8
    $region5: #{tpu_custom_call.1} parent=1 // pred_fallthru
      _
    // Predicated region
    $region6: #{tpu_custom_call.1} parent=1 // pred_check
      _
    $region7: #{tpu_custom_call.1} parent=1 // pred_check_branch
      %33 = sbr.rel (0) target = $region9
    $region8: #{tpu_custom_call.1} parent=1 // pred_region
      %s35 = ssub.s32 512, 512
      %36 = vsyncadd [#allocation6], %s35
      %s37 = sshll.u32 [#allocation5], 4
      %s38 = int_to_ptr.vmem [resolvable:$true] %s37
      %43 = dma.hbm_to_vmem [thread:$0]  %s1, 512, %s38, [#allocation6], 128, 128, 8
    $region9: #{tpu_custom_call.1} parent=1 // pred_fallthru
      _
    // Predicated region
    $region10: #{tpu_custom_call.1} parent=1 // pred_check
      _
    $region11: #{tpu_custom_call.1} parent=1 // pred_check_branch
      %45 = sbr.rel (0) target = $region13
    $region12: #{tpu_custom_call.1} parent=1 // pred_region
      %46 = dma.done [#allocation3], 1536
    $region13: #{tpu_custom_call.1} parent=1 // pred_fallthru
      _
    // Predicated region
    $region14: #{tpu_custom_call.1} parent=1 // pred_check
      _
    $region15: #{tpu_custom_call.1} parent=1 // pred_check_branch
      %48 = sbr.rel (0) target = $region17
    $region16: #{tpu_custom_call.1} parent=1 // pred_region
      %49 = dma.done [#allocation6], 512
    $region17: #{tpu_custom_call.1} parent=1 // pred_fallthru
      _
    %v50 = vlaneseq
    %v51 = vand.u32 %v50, 127
    %v52 = vlaneseq
    %v53 = vshrl.u32 %v52, 7
    %v54 = vadd.s32 %v53, 8
    %v55 = vadd.s32 %v53, 16
    %v56 = vadd.s32 %v53, 24
    %s57 = smul.u32 0, 16
    %s58 = ssub.s32 %s57, 8
    %v59 = vstv %s58
    %v60 = vadd.s32 %v53, %v59
    %v61 = vadd.s32 %v54, %v59
    %v62 = vadd.s32 %v55, %v59
    %v63 = vadd.s32 %v56, %v59
    %vm64 = vcmp.ge.s32.totalorder %v60, 0
    %vm65 = vcmp.ge.s32.totalorder %v61, 0
    %vm66 = vcmp.ge.s32.totalorder %v62, 0
    %vm67 = vcmp.ge.s32.totalorder %v63, 0
    %vm68 = vcmp.lt.s32.totalorder %v60, 16
    %vm69 = vcmp.lt.s32.totalorder %v61, 16
    %vm70 = vcmp.lt.s32.totalorder %v62, 16
    %vm71 = vcmp.lt.s32.totalorder %v63, 16
    %vm72 = vmand %vm64, %vm68
    %vm73 = vmand %vm65, %vm69
    %vm74 = vmand %vm66, %vm70
    %vm75 = vmand %vm67, %vm71
    %vm76 = vcmp.lt.s32.totalorder %v51, 16
    %vm77 = vmand %vm72, %vm76
    %vm78 = vmand %vm73, %vm76
    %vm79 = vmand %vm74, %vm76
    %vm80 = vmand %vm75, %vm76
    %v81 = vadd.s32 %v51, 4294967294
    %vm82 = vcmp.ge.s32.totalorder %v81, 0
    %vm83 = vcmp.lt.s32.totalorder %v81, 16
    %vm84 = vmand %vm82, %vm83
    %v85 = vadd.s32 %v51, 4294967295
    %vm86 = vcmp.ge.s32.totalorder %v85, 0
    %vm87 = vcmp.lt.s32.totalorder %v85, 16
    %vm88 = vmand %vm86, %vm87
    %v89 = vadd.s32 %v51, 1
    %vm90 = vcmp.ge.s32.totalorder %v89, 0
    %vm91 = vcmp.lt.s32.totalorder %v89, 16
    %vm92 = vmand %vm90, %vm91
    %v93 = vadd.s32 %v51, 2
    %vm94 = vcmp.ge.s32.totalorder %v93, 0
    %vm95 = vcmp.lt.s32.totalorder %v93, 16
    %vm96 = vmand %vm94, %vm95
    %v97 = vld [vmem:[#allocation2] sm:$0xff]
    %v98 = vld [vmem:[#allocation2 + $0x8] sm:$0xff]
    %v99 = vld [vmem:[#allocation2 + $0x10] sm:$0xff]
    %v100 = vld [vmem:[#allocation2 + $0x18] sm:$0xff]
    %s101 = scalar_lea.vmem [#allocation2], 32
    %v102 = vld [vmem:[%s101] sm:$0xff]
    %v103 = vld [vmem:[%s101 + $0x8] sm:$0xff]
    %v104 = vld [vmem:[%s101 + $0x10] sm:$0xff]
    %v105 = vld [vmem:[%s101 + $0x18] sm:$0xff]
    %s106 = scalar_lea.vmem [#allocation2], 64
    %v107 = vld [vmem:[%s106] sm:$0xff]
    %v108 = vld [vmem:[%s106 + $0x8] sm:$0xff]
    %v109 = vld [vmem:[%s106 + $0x10] sm:$0xff]
    %v110 = vld [vmem:[%s106 + $0x18] sm:$0xff]
    %v111 = vmul.f32 %v97, 0.299
    %v112 = vmul.f32 %v98, 0.299
    %v113 = vmul.f32 %v99, 0.299
    %v114 = vmul.f32 %v100, 0.299
    %v115 = vmul.f32 %v102, 0.587
    %v116 = vmul.f32 %v103, 0.587
    %v117 = vmul.f32 %v104, 0.587
    %v118 = vmul.f32 %v105, 0.587
    %v119 = vadd.f32 %v111, %v115
    %v120 = vadd.f32 %v112, %v116
    %v121 = vadd.f32 %v113, %v117
    %v122 = vadd.f32 %v114, %v118
    %v123 = vmul.f32 %v107, 0.114
    %v124 = vmul.f32 %v108, 0.114
    %v125 = vmul.f32 %v109, 0.114
    %v126 = vmul.f32 %v110, 0.114
    %v127 = vadd.f32 %v119, %v123
    %v128 = vadd.f32 %v120, %v124
    %v129 = vadd.f32 %v121, %v125
    %v130 = vadd.f32 %v122, %v126
    %v131 = vmax.f32 %v127, 0.0
    %v132 = vmax.f32 %v128, 0.0
    %v133 = vmax.f32 %v129, 0.0
    %v134 = vmax.f32 %v130, 0.0
    %v135 = vmin.f32 %v131, 1.0
    %v136 = vmin.f32 %v132, 1.0
    %v137 = vmin.f32 %v133, 1.0
    %v138 = vmin.f32 %v134, 1.0
    %139 = vrot.lane.b32.xlu0 %v135, 2
    %v140 = vpop.permute.xlu0 %139
    %141 = vrot.lane.b32.xlu0 %v136, 2
    %v142 = vpop.permute.xlu0 %141
    %143 = vrot.lane.b32.xlu0 %v137, 2
    %v144 = vpop.permute.xlu0 %143
    %145 = vrot.lane.b32.xlu0 %v138, 2
    %v146 = vpop.permute.xlu0 %145
    %v147 = vsel %vm84, %v140, 0.0
    %v148 = vsel %vm84, %v142, 0.0
    %v149 = vsel %vm84, %v144, 0.0
    %v150 = vsel %vm84, %v146, 0.0
    %v151 = vmul.f32 %v147, 0.13533528
    %v152 = vmul.f32 %v148, 0.13533528
    %v153 = vmul.f32 %v149, 0.13533528
    %v154 = vmul.f32 %v150, 0.13533528
    %v155 = vadd.f32 %v135, %v151
    %v156 = vadd.f32 %v136, %v152
    %v157 = vadd.f32 %v137, %v153
    %v158 = vadd.f32 %v138, %v154
    %159 = vrot.lane.b32.xlu0 %v135, 1
    %v160 = vpop.permute.xlu0 %159
    %161 = vrot.lane.b32.xlu0 %v136, 1
    %v162 = vpop.permute.xlu0 %161
    %163 = vrot.lane.b32.xlu0 %v137, 1
    %v164 = vpop.permute.xlu0 %163
    %165 = vrot.lane.b32.xlu0 %v138, 1
    %v166 = vpop.permute.xlu0 %165
    %v167 = vsel %vm88, %v160, 0.0
    %v168 = vsel %vm88, %v162, 0.0
    %v169 = vsel %vm88, %v164, 0.0
    %v170 = vsel %vm88, %v166, 0.0
    %v171 = vmul.f32 %v167, 0.60653067
    %v172 = vmul.f32 %v168, 0.60653067
    %v173 = vmul.f32 %v169, 0.60653067
    %v174 = vmul.f32 %v170, 0.60653067
    %v175 = vadd.f32 %v155, %v171
    %v176 = vadd.f32 %v156, %v172
    %v177 = vadd.f32 %v157, %v173
    %v178 = vadd.f32 %v158, %v174
    %179 = vrot.lane.b32.xlu0 %v135, 127
    %v180 = vpop.permute.xlu0 %179
    %181 = vrot.lane.b32.xlu0 %v136, 127
    %v182 = vpop.permute.xlu0 %181
    %183 = vrot.lane.b32.xlu0 %v137, 127
    %v184 = vpop.permute.xlu0 %183
    %185 = vrot.lane.b32.xlu0 %v138, 127
    %v186 = vpop.permute.xlu0 %185
    %v187 = vsel %vm92, %v180, 0.0
    %v188 = vsel %vm92, %v182, 0.0
    %v189 = vsel %vm92, %v184, 0.0
    %v190 = vsel %vm92, %v186, 0.0
    %v191 = vmul.f32 %v187, 0.60653067
    %v192 = vmul.f32 %v188, 0.60653067
    %v193 = vmul.f32 %v189, 0.60653067
    %v194 = vmul.f32 %v190, 0.60653067
    %v195 = vadd.f32 %v175, %v191
    %v196 = vadd.f32 %v176, %v192
    %v197 = vadd.f32 %v177, %v193
    %v198 = vadd.f32 %v178, %v194
    %199 = vrot.lane.b32.xlu0 %v135, 126
    %v200 = vpop.permute.xlu0 %199
    %201 = vrot.lane.b32.xlu0 %v136, 126
    %v202 = vpop.permute.xlu0 %201
    %203 = vrot.lane.b32.xlu0 %v137, 126
    %v204 = vpop.permute.xlu0 %203
    %205 = vrot.lane.b32.xlu0 %v138, 126
    %v206 = vpop.permute.xlu0 %205
    %v207 = vsel %vm96, %v200, 0.0
    %v208 = vsel %vm96, %v202, 0.0
    %v209 = vsel %vm96, %v204, 0.0
    %v210 = vsel %vm96, %v206, 0.0
    %v211 = vmul.f32 %v207, 0.13533528
    %v212 = vmul.f32 %v208, 0.13533528
    %v213 = vmul.f32 %v209, 0.13533528
    %v214 = vmul.f32 %v210, 0.13533528
    %v215 = vadd.f32 %v195, %v211
    %v216 = vadd.f32 %v196, %v212
    %v217 = vadd.f32 %v197, %v213
    %v218 = vadd.f32 %v198, %v214
    %v219 = vld [vmem:[#allocation5] sm:$0xff]
    %v220 = vld [vmem:[#allocation5 + $0x8] sm:$0xff]
    %v221 = vld [vmem:[#allocation5 + $0x10] sm:$0xff]
    %v222 = vld [vmem:[#allocation5 + $0x18] sm:$0xff]
    %vm223 = vcmask 261120
    %v225 = vsel %vm223, %v219, 0
    %v228 = vsel %vm223, %v220, 0
    %v231 = vsel %vm223, %v221, 0
    %v234 = vsel %vm223, %v222, 0
    %236 = vmatprep.subr.mxu0 0.0
    %237 = vmatpush1.msra.mxu0 0.0
    %238 = vmatprep.subr.mxu0 0.0
    %239 = vmatpush1.msra.mxu0 0.0
    %240 = vmatprep.subr.mxu0 0.0
    %241 = vmatpush1.msra.mxu0 0.0
    %242 = vmatprep.subr.mxu0 0.0
    %243 = vmatpush1.msra.mxu0 0.0
    %244 = vmatprep.subr.mxu0 0.0
    %245 = vmatpush1.msra.mxu0 0.0
    %246 = vmatprep.subr.mxu0 0.0
    %247 = vmatpush1.msra.mxu0 0.0
    %248 = vmatprep.subr.mxu0 0.0
    %249 = vmatpush1.msra.mxu0 0.0
    %250 = vmatprep.subr.mxu0 0.0
    %251 = vmatpush1.msra.mxu0 0.0
    %252 = vmatprep.subr.mxu0 0.0
    %253 = vmatpush1.msra.mxu0 0.0
    %254 = vmatprep.subr.mxu0 0.0
    %255 = vmatpush1.msra.mxu0 0.0
    %256 = vmatprep.subr.mxu0 0.0
    %257 = vmatpush1.msra.mxu0 0.0
    %258 = vmatprep.subr.mxu0 0.0
    %259 = vmatpush1.msra.mxu0 0.0
    %260 = vmatprep.subr.mxu0 0.0
    %261 = vmatpush1.msra.mxu0 %v218
    %262 = vmatprep.subr.mxu0 0.0
    %263 = vmatpush1.msra.mxu0 %v217
    %264 = vmatprep.subr.mxu0 0.0
    %265 = vmatpush1.msra.mxu0 %v216
    %266 = vmatprep.subr.mxu0 0.0
    %267 = vmatpush1.msra.mxu0 %v215
    %268 = vmatprep.subr.mxu0 0.0
    %269 = vmatpush2.msra.mxu0 0.0
    %270 = vmatprep.subr.mxu0 0.0
    %271 = vmatpush2.msra.mxu0 0.0
    %272 = vmatprep.subr.mxu0 0.0
    %273 = vmatpush2.msra.mxu0 0.0
    %274 = vmatprep.subr.mxu0 0.0
    %275 = vmatpush2.msra.mxu0 0.0
    %276 = vmatprep.subr.mxu0 0.0
    %277 = vmatpush2.msra.mxu0 0.0
    %278 = vmatprep.subr.mxu0 0.0
    %279 = vmatpush2.msra.mxu0 0.0
    %280 = vmatprep.subr.mxu0 0.0
    %281 = vmatpush2.msra.mxu0 0.0
    %282 = vmatprep.subr.mxu0 0.0
    %283 = vmatpush2.msra.mxu0 0.0
    %284 = vmatprep.subr.mxu0 0.0
    %285 = vmatpush2.msra.mxu0 0.0
    %286 = vmatprep.subr.mxu0 0.0
    %287 = vmatpush2.msra.mxu0 0.0
    %288 = vmatprep.subr.mxu0 0.0
    %289 = vmatpush2.msra.mxu0 0.0
    %290 = vmatprep.subr.mxu0 0.0
    %291 = vmatpush2.msra.mxu0 0.0
    %292 = vmatprep.subr.mxu0 0.0
    %293 = vmatpush2.msra.mxu0 0.0
    %294 = vmatprep.subr.mxu0 0.0
    %295 = vmatpush2.msra.mxu0 0.0
    %296 = vmatprep.subr.mxu0 0.0
    %297 = vmatpush2.msra.mxu0 0.0
    %298 = vmatprep.subr.mxu0 0.0
    %299 = vmatpush2.msra.mxu0 0.0
    %300 = vmatprep.mubr.f32.mxu0 0.0
    %301 = vmatmul.mubr.f32.gmra.mxu0 %v225
    %v302 = vpop.f32.mrf.mxu0
    %v303 = vadd.f32 0.0, %v302
    %v304 = vpop.f32.mrf.mxu0
    %305 = vmatprep.mubr.f32.mxu0 0.0
    %306 = vmatmul.mubr.f32.gmra.mxu0 %v228
    %v307 = vpop.f32.mrf.mxu0
    %v308 = vadd.f32 0.0, %v307
    %v309 = vpop.f32.mrf.mxu0
    %310 = vmatprep.mubr.f32.mxu0 0.0
    %311 = vmatmul.mubr.f32.gmra.mxu0 %v231
    %v312 = vpop.f32.mrf.mxu0
    %v313 = vadd.f32 0.0, %v312
    %v314 = vpop.f32.mrf.mxu0
    %315 = vmatprep.mubr.f32.mxu0 0.0
    %316 = vmatmul.mubr.f32.gmra.mxu0 %v234
    %v317 = vpop.f32.mrf.mxu0
    %v318 = vadd.f32 0.0, %v317
    %v319 = vpop.f32.mrf.mxu0
    %320 = vdwg.mxu0
    %v321 = vsel %vm77, %v303, 0.0
    %v322 = vsel %vm78, %v308, 0.0
    %v323 = vsel %vm79, %v313, 0.0
    %v324 = vsel %vm80, %v318, 0.0
    %325 = vst [vmem:[#allocation7] sm:$0xff] %v322
    %326 = vst [vmem:[#allocation7 + $0x8] sm:$0xff] %v323
    %v327 = vrot.slane %v321, 7
    %v328 = vrot.slane %v322, 7
    %v329 = vrot.slane %v323, 7
    %v330 = vrot.slane %v324, 7
    %vm331 = vcmp.lt.s32.totalorder %v53, 1
    %v332 = vsel %vm331, %v329, %v330
    %v333 = vsel %vm331, %v328, %v329
    %v334 = vsel %vm331, %v327, %v328
    %v335 = vsel %vm331, %v330, %v327
    %v336 = vrot.slane %v321, 1
    %v337 = vrot.slane %v322, 1
    %v338 = vrot.slane %v323, 1
    %v339 = vrot.slane %v324, 1
    %vm340 = vcmp.lt.s32.totalorder %v53, 7
    %v341 = vsel %vm340, %v338, %v339
    %v342 = vsel %vm340, %v337, %v338
    %v343 = vsel %vm340, %v336, %v337
    %v344 = vsel %vm340, %v339, %v336
    %v345 = vmul.f32 %v321, 2.0
    %v346 = vmul.f32 %v322, 2.0
    %v347 = vmul.f32 %v323, 2.0
    %v348 = vmul.f32 %v324, 2.0
    %v349 = vadd.f32 %v335, %v345
    %v350 = vadd.f32 %v334, %v346
    %v351 = vadd.f32 %v333, %v347
    %v352 = vadd.f32 %v332, %v348
    %v353 = vadd.f32 %v349, %v343
    %v354 = vadd.f32 %v350, %v342
    %v355 = vadd.f32 %v351, %v341
    %v356 = vadd.f32 %v352, %v344
    %v357 = vsub.f32 %v335, %v343
    %v358 = vsub.f32 %v334, %v342
    %v359 = vsub.f32 %v333, %v341
    %v360 = vsub.f32 %v332, %v344
    %361 = vrot.lane.b32.xlu0 %v353, 1
    %v362 = vpop.permute.xlu0 %361
    %363 = vrot.lane.b32.xlu0 %v354, 1
    %v364 = vpop.permute.xlu0 %363
    %365 = vrot.lane.b32.xlu0 %v355, 1
    %v366 = vpop.permute.xlu0 %365
    %367 = vrot.lane.b32.xlu0 %v356, 1
    %v368 = vpop.permute.xlu0 %367
    %v369 = vsel %vm88, %v362, 0.0
    %v370 = vsel %vm88, %v364, 0.0
    %v371 = vsel %vm88, %v366, 0.0
    %v372 = vsel %vm88, %v368, 0.0
    %373 = vrot.lane.b32.xlu0 %v353, 127
    %v374 = vpop.permute.xlu0 %373
    %375 = vrot.lane.b32.xlu0 %v354, 127
    %v376 = vpop.permute.xlu0 %375
    %377 = vrot.lane.b32.xlu0 %v355, 127
    %v378 = vpop.permute.xlu0 %377
    %379 = vrot.lane.b32.xlu0 %v356, 127
    %v380 = vpop.permute.xlu0 %379
    %v381 = vsel %vm92, %v374, 0.0
    %v382 = vsel %vm92, %v376, 0.0
    %v383 = vsel %vm92, %v378, 0.0
    %v384 = vsel %vm92, %v380, 0.0
    %v385 = vsub.f32 %v369, %v381
    %v386 = vsub.f32 %v370, %v382
    %v387 = vsub.f32 %v371, %v383
    %v388 = vsub.f32 %v372, %v384
    %389 = vrot.lane.b32.xlu0 %v357, 1
    %v390 = vpop.permute.xlu0 %389
    %391 = vrot.lane.b32.xlu0 %v358, 1
    %v392 = vpop.permute.xlu0 %391
    %393 = vrot.lane.b32.xlu0 %v359, 1
    %v394 = vpop.permute.xlu0 %393
    %395 = vrot.lane.b32.xlu0 %v360, 1
    %v396 = vpop.permute.xlu0 %395
    %v397 = vsel %vm88, %v390, 0.0
    %v398 = vsel %vm88, %v392, 0.0
    %v399 = vsel %vm88, %v394, 0.0
    %v400 = vsel %vm88, %v396, 0.0
    %v401 = vmul.f32 %v357, 2.0
    %v402 = vmul.f32 %v358, 2.0
    %v403 = vmul.f32 %v359, 2.0
    %v404 = vmul.f32 %v360, 2.0
    %v405 = vadd.f32 %v397, %v401
    %v406 = vadd.f32 %v398, %v402
    %v407 = vadd.f32 %v399, %v403
    %v408 = vadd.f32 %v400, %v404
    %409 = vrot.lane.b32.xlu0 %v357, 127
    %v410 = vpop.permute.xlu0 %409
    %411 = vrot.lane.b32.xlu0 %v358, 127
    %v412 = vpop.permute.xlu0 %411
    %413 = vrot.lane.b32.xlu0 %v359, 127
    %v414 = vpop.permute.xlu0 %413
    %415 = vrot.lane.b32.xlu0 %v360, 127
    %v416 = vpop.permute.xlu0 %415
    %v417 = vsel %vm92, %v410, 0.0
    %v418 = vsel %vm92, %v412, 0.0
    %v419 = vsel %vm92, %v414, 0.0
    %v420 = vsel %vm92, %v416, 0.0
    %v421 = vadd.f32 %v405, %v417
    %v422 = vadd.f32 %v406, %v418
    %v423 = vadd.f32 %v407, %v419
    %v424 = vadd.f32 %v408, %v420
    %v425 = vmul.f32 %v385, %v385
    %v426 = vmul.f32 %v386, %v386
    %v427 = vmul.f32 %v387, %v387
    %v428 = vmul.f32 %v388, %v388
    %v429 = vmul.f32 %v421, %v421
    %v430 = vmul.f32 %v422, %v422
    %v431 = vmul.f32 %v423, %v423
    %v432 = vmul.f32 %v424, %v424
    %v433 = vadd.f32 %v425, %v429
    %v434 = vadd.f32 %v426, %v430
    %v435 = vadd.f32 %v427, %v431
    %v436 = vadd.f32 %v428, %v432
    %v437 = vrsqrt.pop %v433
    %v438 = vmul.f32 %v433, %v437
    %vm439 = vcmp.eq.f32.partialorder %v433, inf
    %v440 = vsel %vm439, %v433, %v438
    %vm441 = vcmp.eq.f32.partialorder %v433, 0.0
    %v442 = vand.u32 %v433, 2147483648
    %v443 = vsel %vm441, %v442, %v440
    %v444 = vrsqrt.pop %v434
    %v445 = vmul.f32 %v434, %v444
    %vm446 = vcmp.eq.f32.partialorder %v434, inf
    %v447 = vsel %vm446, %v434, %v445
    %vm448 = vcmp.eq.f32.partialorder %v434, 0.0
    %v449 = vand.u32 %v434, 2147483648
    %v450 = vsel %vm448, %v449, %v447
    %v451 = vrsqrt.pop %v435
    %v452 = vmul.f32 %v435, %v451
    %vm453 = vcmp.eq.f32.partialorder %v435, inf
    %v454 = vsel %vm453, %v435, %v452
    %vm455 = vcmp.eq.f32.partialorder %v435, 0.0
    %v456 = vand.u32 %v435, 2147483648
    %v457 = vsel %vm455, %v456, %v454
    %v458 = vrsqrt.pop %v436
    %v459 = vmul.f32 %v436, %v458
    %vm460 = vcmp.eq.f32.partialorder %v436, inf
    %v461 = vsel %vm460, %v436, %v459
    %vm462 = vcmp.eq.f32.partialorder %v436, 0.0
    %v463 = vand.u32 %v436, 2147483648
    %v464 = vsel %vm462, %v463, %v461
    %v465 = vsel %vm77, %v443, 0.0
    %v466 = vsel %vm78, %v450, 0.0
    %v467 = vsel %vm79, %v457, 0.0
    %v468 = vsel %vm80, %v464, 0.0
    %469 = vst [vmem:[#allocation8] sm:$0xff] %v466
    %470 = vst [vmem:[#allocation8 + $0x8] sm:$0xff] %v467
    %v471 = vand.u32 2147483647, %v386
    %v472 = vand.u32 2147483647, %v387
    %v473 = vand.u32 2147483647, %v422
    %v474 = vand.u32 2147483647, %v423
    %v475 = vmax.f32 %v471, %v473
    %v476 = vmax.f32 %v472, %v474
    %v477 = vmin.f32 %v471, %v473
    %v478 = vmin.f32 %v472, %v474
    %vm479 = vcmp.eq.f32.partialorder %v475, 0.0
    %vm480 = vcmp.eq.f32.partialorder %v476, 0.0
    %v481 = vsel %vm479, 1.0, %v475
    %v482 = vsel %vm480, 1.0, %v476
    %v483 = vrcp.pop %v481
    %v484 = vrcp.pop %v482
    %v485 = vmul.f32 %v481, %v483
    %v486 = vmul.f32 %v482, %v484
    %v487 = vsub.f32 2.0, %v485
    %v488 = vsub.f32 2.0, %v486
    %v489 = vmul.f32 %v483, %v487
    %v490 = vmul.f32 %v484, %v488
    %v491 = vmul.f32 %v477, %v489
    %v492 = vmul.f32 %v478, %v490
    %vm493 = vcmp.gt.f32.partialorder %v491, 0.41421357
    %vm494 = vcmp.gt.f32.partialorder %v492, 0.41421357
    %v495 = vsub.f32 %v491, 1.0
    %v496 = vsub.f32 %v492, 1.0
    %v497 = vadd.f32 %v491, 1.0
    %v498 = vadd.f32 %v492, 1.0
    %v499 = vrcp.pop %v497
    %v500 = vrcp.pop %v498
    %v501 = vmul.f32 %v497, %v499
    %v502 = vmul.f32 %v498, %v500
    %v503 = vsub.f32 2.0, %v501
    %v504 = vsub.f32 2.0, %v502
    %v505 = vmul.f32 %v499, %v503
    %v506 = vmul.f32 %v500, %v504
    %v507 = vmul.f32 %v495, %v505
    %v508 = vmul.f32 %v496, %v506
    %v509 = vsel %vm493, %v507, %v491
    %v510 = vsel %vm494, %v508, %v492
    %v511 = vmul.f32 %v509, %v509
    %v512 = vmul.f32 %v510, %v510
    %v513 = vmul.f32 %v511, 0.080537446
    %v514 = vmul.f32 %v512, 0.080537446
    %v515 = vsub.f32 %v513, 0.13877685
    %v516 = vsub.f32 %v514, 0.13877685
    %v517 = vmul.f32 %v515, %v511
    %v518 = vmul.f32 %v516, %v512
    %v519 = vadd.f32 %v517, 0.19977711
    %v520 = vadd.f32 %v518, 0.19977711
    %v521 = vmul.f32 %v519, %v511
    %v522 = vmul.f32 %v520, %v512
    %v523 = vsub.f32 %v521, 0.3333295
    %v524 = vsub.f32 %v522, 0.3333295
    %v525 = vmul.f32 %v523, %v511
    %v526 = vmul.f32 %v524, %v512
    %v527 = vmul.f32 %v525, %v509
    %v528 = vmul.f32 %v526, %v510
    %v529 = vadd.f32 %v527, %v509
    %v530 = vadd.f32 %v528, %v510
    %v531 = vadd.f32 %v529, 0.7853982
    %v532 = vadd.f32 %v530, 0.7853982
    %v533 = vsel %vm493, %v531, %v529
    %v534 = vsel %vm494, %v532, %v530
    %vm535 = vcmp.gt.f32.partialorder %v473, %v471
    %vm536 = vcmp.gt.f32.partialorder %v474, %v472
    %v537 = vsub.f32 1.5707964, %v533
    %v538 = vsub.f32 1.5707964, %v534
    %v539 = vsel %vm535, %v537, %v533
    %v540 = vsel %vm536, %v538, %v534
    %vm541 = vcmp.lt.f32.partialorder %v386, 0.0
    %vm542 = vcmp.lt.f32.partialorder %v387, 0.0
    %v543 = vsub.f32 3.1415927, %v539
    %v544 = vsub.f32 3.1415927, %v540
    %v545 = vsel %vm541, %v543, %v539
    %v546 = vsel %vm542, %v544, %v540
    %vm547 = vcmp.lt.f32.partialorder %v422, 0.0
    %vm548 = vcmp.lt.f32.partialorder %v423, 0.0
    %v549 = vsub.f32 0.0, %v545
    %v550 = vsub.f32 0.0, %v546
    %v551 = vsel %vm547, %v549, %v545
    %v552 = vsel %vm548, %v550, %v546
    %v553 = vmul.f32 %v551, 57.29583
    %v554 = vmul.f32 %v552, 57.29583
    %v555 = vadd.f32 %v553, 180.0
    %v556 = vadd.f32 %v554, 180.0
    %v557 = vmul.f32 %v555, 0.022222223
    %v558 = vmul.f32 %v556, 0.022222223
    %v559 = vadd.f32 %v557, 0.5
    %v560 = vadd.f32 %v558, 0.5
    %v561 = vcvt.f32.s32.to.zero.pseudo %v559
    %v562 = vcvt.f32.s32.to.zero.pseudo %v560
    %v563 = vcvt.s32.f32 %v561
    %v564 = vcvt.s32.f32 %v562
    %v565 = vmul.f32 %v563, 45.0
    %v566 = vmul.f32 %v564, 45.0
    %567 = vst [vmem:[#allocation10] sm:$0xff] %v565
    %568 = vst [vmem:[#allocation10 + $0x8] sm:$0xff] %v566
    %vm569 = vcmp.ge.s32.totalorder %v561, 8
    %vm570 = vcmp.ge.s32.totalorder %v562, 8
    %v571 = vsel %vm569, 1, 0
    %v572 = vsel %vm570, 1, 0
    %v573 = vmul.u32 %v571, 8
    %v574 = vmul.u32 %v572, 8
    %v575 = vsub.s32 %v561, %v573
    %v576 = vsub.s32 %v562, %v574
    %v577 = vrot.slane %v465, 7
    %v578 = vrot.slane %v466, 7
    %v579 = vrot.slane %v467, 7
    %v580 = vsel %vm331, %v578, %v579
    %v581 = vsel %vm331, %v577, %v578
    %v582 = vrot.slane %v466, 1
    %v583 = vrot.slane %v467, 1
    %v584 = vrot.slane %v468, 1
    %v585 = vsel %vm340, %v583, %v584
    %v586 = vsel %vm340, %v582, %v583
    %587 = vrot.lane.b32.xlu0 %v466, 127
    %v588 = vpop.permute.xlu0 %587
    %589 = vrot.lane.b32.xlu0 %v467, 127
    %v590 = vpop.permute.xlu0 %589
    %v591 = vsel %vm92, %v588, 0.0
    %v592 = vsel %vm92, %v590, 0.0
    %593 = vrot.lane.b32.xlu0 %v586, 127
    %v594 = vpop.permute.xlu0 %593
    %595 = vrot.lane.b32.xlu0 %v585, 127
    %v596 = vpop.permute.xlu0 %595
    %v597 = vsel %vm92, %v594, 0.0
    %v598 = vsel %vm92, %v596, 0.0
    %599 = vrot.lane.b32.xlu0 %v586, 1
    %v600 = vpop.permute.xlu0 %599
    %601 = vrot.lane.b32.xlu0 %v585, 1
    %v602 = vpop.permute.xlu0 %601
    %v603 = vsel %vm88, %v600, 0.0
    %v604 = vsel %vm88, %v602, 0.0
    %605 = vrot.lane.b32.xlu0 %v466, 1
    %v606 = vpop.permute.xlu0 %605
    %607 = vrot.lane.b32.xlu0 %v467, 1
    %v608 = vpop.permute.xlu0 %607
    %v609 = vsel %vm88, %v606, 0.0
    %v610 = vsel %vm88, %v608, 0.0
    %611 = vrot.lane.b32.xlu0 %v581, 1
    %v612 = vpop.permute.xlu0 %611
    %613 = vrot.lane.b32.xlu0 %v580, 1
    %v614 = vpop.permute.xlu0 %613
    %v615 = vsel %vm88, %v612, 0.0
    %v616 = vsel %vm88, %v614, 0.0
    %617 = vrot.lane.b32.xlu0 %v581, 127
    %v618 = vpop.permute.xlu0 %617
    %619 = vrot.lane.b32.xlu0 %v580, 127
    %v620 = vpop.permute.xlu0 %619
    %v621 = vsel %vm92, %v618, 0.0
    %v622 = vsel %vm92, %v620, 0.0
    %vm623 = vcmp.eq.s32.totalorder %v575, 0
    %vm624 = vcmp.eq.s32.totalorder %v576, 0
    %vm625 = vcmp.eq.s32.totalorder %v575, 1
    %vm626 = vcmp.eq.s32.totalorder %v576, 1
    %vm627 = vcmp.eq.s32.totalorder %v575, 2
    %vm628 = vcmp.eq.s32.totalorder %v576, 2
    %vm629 = vcmp.eq.s32.totalorder %v575, 3
    %vm630 = vcmp.eq.s32.totalorder %v576, 3
    %vm631 = vcmp.eq.s32.totalorder %v575, 4
    %vm632 = vcmp.eq.s32.totalorder %v576, 4
    %vm633 = vcmp.eq.s32.totalorder %v575, 5
    %vm634 = vcmp.eq.s32.totalorder %v576, 5
    %vm635 = vcmp.eq.s32.totalorder %v575, 6
    %vm636 = vcmp.eq.s32.totalorder %v576, 6
    %vm637 = vcmp.eq.s32.totalorder %v575, 7
    %vm638 = vcmp.eq.s32.totalorder %v576, 7
    %v639 = vsub.f32 %v466, %v591
    %v640 = vsub.f32 %v467, %v592
    %v641 = vsel %vm623, %v639, 0.0
    %v642 = vsel %vm624, %v640, 0.0
    %v643 = vsel %vm631, %v639, 0.0
    %v644 = vsel %vm632, %v640, 0.0
    %v645 = vsub.f32 %v466, %v597
    %v646 = vsub.f32 %v467, %v598
    %v647 = vsel %vm625, %v645, %v641
    %v648 = vsel %vm626, %v646, %v642
    %v649 = vsel %vm633, %v645, %v643
    %v650 = vsel %vm634, %v646, %v644
    %v651 = vsub.f32 %v466, %v586
    %v652 = vsub.f32 %v467, %v585
    %v653 = vsel %vm627, %v651, %v647
    %v654 = vsel %vm628, %v652, %v648
    %v655 = vsel %vm635, %v651, %v649
    %v656 = vsel %vm636, %v652, %v650
    %v657 = vsub.f32 %v466, %v603
    %v658 = vsub.f32 %v467, %v604
    %v659 = vsel %vm629, %v657, %v653
    %v660 = vsel %vm630, %v658, %v654
    %v661 = vsel %vm637, %v657, %v655
    %v662 = vsel %vm638, %v658, %v656
    %v663 = vsub.f32 %v466, %v609
    %v664 = vsub.f32 %v467, %v610
    %v665 = vsel %vm631, %v663, %v659
    %v666 = vsel %vm632, %v664, %v660
    %v667 = vsel %vm623, %v663, %v661
    %v668 = vsel %vm624, %v664, %v662
    %v669 = vsub.f32 %v466, %v615
    %v670 = vsub.f32 %v467, %v616
    %v671 = vsel %vm633, %v669, %v665
    %v672 = vsel %vm634, %v670, %v666
    %v673 = vsel %vm625, %v669, %v667
    %v674 = vsel %vm626, %v670, %v668
    %v675 = vsub.f32 %v466, %v581
    %v676 = vsub.f32 %v467, %v580
    %v677 = vsel %vm635, %v675, %v671
    %v678 = vsel %vm636, %v676, %v672
    %v679 = vsel %vm627, %v675, %v673
    %v680 = vsel %vm628, %v676, %v674
    %v681 = vsub.f32 %v466, %v621
    %v682 = vsub.f32 %v467, %v622
    %v683 = vsel %vm637, %v681, %v677
    %v684 = vsel %vm638, %v682, %v678
    %v685 = vsel %vm629, %v681, %v679
    %v686 = vsel %vm630, %v682, %v680
    %v687 = vmin.f32 %v683, %v685
    %v688 = vmin.f32 %v684, %v686
    %vm689 = vcmp.gt.f32.partialorder %v687, 0.0
    %vm690 = vcmp.gt.f32.partialorder %v688, 0.0
    %v691 = vsel %vm689, %v466, 0.0
    %v692 = vsel %vm690, %v467, 0.0
    %vm693 = vcmp.gt.f32.partialorder %v465, 0.047058824
    %vm694 = vcmp.gt.f32.partialorder %v466, 0.047058824
    %vm695 = vcmp.gt.f32.partialorder %v467, 0.047058824
    %vm696 = vcmp.gt.f32.partialorder %v468, 0.047058824
    %v697 = vsel %vm693, 1, 0
    %v698 = vsel %vm694, 1, 0
    %v699 = vsel %vm695, 1, 0
    %v700 = vsel %vm696, 1, 0
    %v701 = vcvt.s32.f32 %v697
    %v702 = vcvt.s32.f32 %v698
    %v703 = vcvt.s32.f32 %v699
    %v704 = vcvt.s32.f32 %v700
    %705 = vrot.lane.b32.xlu0 %v701, 1
    %v706 = vpop.permute.xlu0 %705
    %707 = vrot.lane.b32.xlu0 %v702, 1
    %v708 = vpop.permute.xlu0 %707
    %709 = vrot.lane.b32.xlu0 %v703, 1
    %v710 = vpop.permute.xlu0 %709
    %711 = vrot.lane.b32.xlu0 %v704, 1
    %v712 = vpop.permute.xlu0 %711
    %713 = vrot.lane.b32.xlu0 %v701, 127
    %v714 = vpop.permute.xlu0 %713
    %715 = vrot.lane.b32.xlu0 %v702, 127
    %v716 = vpop.permute.xlu0 %715
    %717 = vrot.lane.b32.xlu0 %v703, 127
    %v718 = vpop.permute.xlu0 %717
    %719 = vrot.lane.b32.xlu0 %v704, 127
    %v720 = vpop.permute.xlu0 %719
    %vm721 = vcmp.eq.s32.totalorder %v51, 0
    %v722 = vsel %vm721, %v714, %v706
    %v723 = vsel %vm721, %v716, %v708
    %v724 = vsel %vm721, %v718, %v710
    %v725 = vsel %vm721, %v720, %v712
    %vm726 = vcmp.eq.s32.totalorder %v51, 15
    %v727 = vsel %vm726, %v706, %v714
    %v728 = vsel %vm726, %v708, %v716
    %v729 = vsel %vm726, %v710, %v718
    %v730 = vsel %vm726, %v712, %v720
    %v731 = vadd.f32 %v722, %v701
    %v732 = vadd.f32 %v723, %v702
    %v733 = vadd.f32 %v724, %v703
    %v734 = vadd.f32 %v725, %v704
    %v735 = vadd.f32 %v731, %v727
    %v736 = vadd.f32 %v732, %v728
    %v737 = vadd.f32 %v733, %v729
    %v738 = vadd.f32 %v734, %v730
    %v739 = vrot.slane %v735, 7
    %v740 = vrot.slane %v736, 7
    %v741 = vrot.slane %v737, 7
    %v742 = vsel %vm331, %v740, %v741
    %v743 = vsel %vm331, %v739, %v740
    %v744 = vrot.slane %v736, 1
    %v745 = vrot.slane %v737, 1
    %v746 = vrot.slane %v738, 1
    %v747 = vsel %vm340, %v745, %v746
    %v748 = vsel %vm340, %v744, %v745
    %vm749 = vcmp.eq.s32.totalorder %v61, 0
    %vm750 = vcmp.eq.s32.totalorder %v62, 0
    %v751 = vsel %vm749, %v748, %v743
    %v752 = vsel %vm750, %v747, %v742
    %vm753 = vcmp.eq.s32.totalorder %v61, 15
    %vm754 = vcmp.eq.s32.totalorder %v62, 15
    %v755 = vsel %vm753, %v743, %v748
    %v756 = vsel %vm754, %v742, %v747
    %v757 = vadd.f32 %v751, %v736
    %v758 = vadd.f32 %v752, %v737
    %v759 = vadd.f32 %v757, %v755
    %v760 = vadd.f32 %v758, %v756
    %vm761 = vcmp.gt.f32.partialorder %v759, 4.5
    %vm762 = vcmp.gt.f32.partialorder %v760, 4.5
    %v763 = vsel %vm761, 1, 0
    %v764 = vsel %vm762, 1, 0
    %v765 = vcvt.s32.f32 %v763
    %v766 = vcvt.s32.f32 %v764
    %v767 = vsub.f32 1.0, %v765
    %v768 = vsub.f32 1.0, %v766
    %v769 = vmul.f32 %v466, %v767
    %v770 = vmul.f32 %v467, %v768
    %771 = vst [vmem:[#allocation11] sm:$0xff] %v691
    %772 = vst [vmem:[#allocation11 + $0x8] sm:$0xff] %v692
    %v773 = vmul.f32 %v691, %v767
    %v774 = vmul.f32 %v692, %v768
    %775 = vst [vmem:[#allocation13] sm:$0xff] %v773
    %776 = vst [vmem:[#allocation13 + $0x8] sm:$0xff] %v774
    %777 = vst [vmem:[#allocation14] sm:$0xff] %v769
    %778 = vst [vmem:[#allocation14 + $0x8] sm:$0xff] %v770
    %v779 = vadd.f32 %v769, %v770
    %780 = vadd.xlane.f32.xlu0 %v779
    %v781 = vpop.xlane.xlu0 %780
    %v782 = vrot.slane %v781, 4
    %v783 = vadd.f32 %v781, %v782
    %v784 = vrot.slane %v783, 2
    %v785 = vadd.f32 %v783, %v784
    %v786 = vrot.slane %v785, 1
    %v787 = vadd.f32 %v785, %v786
    %s788 = vtos %v787
    %v789 = vstv %s788
    %v790 = vadd.f32 %v789, 0.0
    %791 = vst [vmem:[#allocation16] sm:$0xff] %v790
    // Predicated region
    $region18: #{tpu_custom_call.1} parent=1 // pred_check
      _
    $region19: #{tpu_custom_call.1} parent=1 // pred_check_branch
      %793 = sbr.rel (0) target = $region21
    $region20: #{tpu_custom_call.1} parent=1 // pred_region
      %s795 = ssub.s32 256, 256
      %796 = vsyncadd [#allocation4], %s795
      %s797 = sshll.u32 [#allocation7], 4
      %s798 = int_to_ptr.vmem [resolvable:$true] %s797
      %803 = dma.vmem_to_hbm [thread:$0]  %s798, 256, %s2, [#allocation4], 128, 128, 8
    $region21: #{tpu_custom_call.1} parent=1 // pred_fallthru
      _
    // Predicated region
    $region22: #{tpu_custom_call.1} parent=1 // pred_check
      _
    $region23: #{tpu_custom_call.1} parent=1 // pred_check_branch
      %805 = sbr.rel (0) target = $region25
    $region24: #{tpu_custom_call.1} parent=1 // pred_region
      %s807 = ssub.s32 256, 256
      %808 = vsyncadd [#allocation9], %s807
      %s809 = sshll.u32 [#allocation8], 4
      %s810 = int_to_ptr.vmem [resolvable:$true] %s809
      %815 = dma.vmem_to_hbm [thread:$0]  %s810, 256, %s3, [#allocation9], 128, 128, 8
    $region25: #{tpu_custom_call.1} parent=1 // pred_fallthru
      _
    // Predicated region
    $region26: #{tpu_custom_call.1} parent=1 // pred_check
      _
    $region27: #{tpu_custom_call.1} parent=1 // pred_check_branch
      %817 = sbr.rel (0) target = $region29
    $region28: #{tpu_custom_call.1} parent=1 // pred_region
      %s819 = ssub.s32 256, 256
      %820 = vsyncadd [#allocation9], %s819
      %s821 = sshll.u32 [#allocation10], 4
      %s822 = int_to_ptr.vmem [resolvable:$true] %s821
      %827 = dma.vmem_to_hbm [thread:$0]  %s822, 256, %s4, [#allocation9], 128, 128, 8
    $region29: #{tpu_custom_call.1} parent=1 // pred_fallthru
      _
    // Predicated region
    $region30: #{tpu_custom_call.1} parent=1 // pred_check
      _
    $region31: #{tpu_custom_call.1} parent=1 // pred_check_branch
      %829 = sbr.rel (0) target = $region33
    $region32: #{tpu_custom_call.1} parent=1 // pred_region
      %s831 = ssub.s32 256, 256
      %832 = vsyncadd [#allocation12], %s831
      %s833 = sshll.u32 [#allocation11], 4
      %s834 = int_to_ptr.vmem [resolvable:$true] %s833
      %839 = dma.vmem_to_hbm [thread:$0]  %s834, 256, %s5, [#allocation12], 128, 128, 8
    $region33: #{tpu_custom_call.1} parent=1 // pred_fallthru
      _
    // Predicated region
    $region34: #{tpu_custom_call.1} parent=1 // pred_check
      _
    $region35: #{tpu_custom_call.1} parent=1 // pred_check_branch
      %841 = sbr.rel (0) target = $region37
    $region36: #{tpu_custom_call.1} parent=1 // pred_region
      %s843 = ssub.s32 256, 256
      %844 = vsyncadd [#allocation12], %s843
      %s845 = sshll.u32 [#allocation13], 4
      %s846 = int_to_ptr.vmem [resolvable:$true] %s845
      %851 = dma.vmem_to_hbm [thread:$0]  %s846, 256, %s6, [#allocation12], 128, 128, 8
    $region37: #{tpu_custom_call.1} parent=1 // pred_fallthru
      _
    // Predicated region
    $region38: #{tpu_custom_call.1} parent=1 // pred_check
      _
    $region39: #{tpu_custom_call.1} parent=1 // pred_check_branch
      %853 = sbr.rel (0) target = $region41
    $region40: #{tpu_custom_call.1} parent=1 // pred_region
      %s855 = ssub.s32 256, 256
      %856 = vsyncadd [#allocation15], %s855
      %s857 = sshll.u32 [#allocation14], 4
      %s858 = int_to_ptr.vmem [resolvable:$true] %s857
      %863 = dma.vmem_to_hbm [thread:$0]  %s858, 256, %s7, [#allocation15], 128, 128, 8
    $region41: #{tpu_custom_call.1} parent=1 // pred_fallthru
      _
    // Predicated region
    $region42: #{tpu_custom_call.1} parent=1 // pred_check
      _
    $region43: #{tpu_custom_call.1} parent=1 // pred_check_branch
      %865 = sbr.rel (0) target = $region45
    $region44: #{tpu_custom_call.1} parent=1 // pred_region
      %s867 = ssub.s32 128, 128
      %868 = vsyncadd [#allocation15], %s867
      %s870 = sshll.u32 [#allocation16], 4
      %s871 = int_to_ptr.vmem [resolvable:$true] %s870
      %873 = dma.vmem_to_hbm [thread:$0]  %s871, 128, %s8, [#allocation15]
    $region45: #{tpu_custom_call.1} parent=1 // pred_fallthru
      _
    // Predicated region
    $region46: #{tpu_custom_call.1} parent=1 // pred_check
      _
    $region47: #{tpu_custom_call.1} parent=1 // pred_check_branch
      %875 = sbr.rel (0) target = $region49
    $region48: #{tpu_custom_call.1} parent=1 // pred_region
      %876 = dma.done [#allocation4], 256
    $region49: #{tpu_custom_call.1} parent=1 // pred_fallthru
      _
    // Predicated region
    $region50: #{tpu_custom_call.1} parent=1 // pred_check
      _
    $region51: #{tpu_custom_call.1} parent=1 // pred_check_branch
      %878 = sbr.rel (0) target = $region53
    $region52: #{tpu_custom_call.1} parent=1 // pred_region
      %879 = dma.done [#allocation9], 256
    $region53: #{tpu_custom_call.1} parent=1 // pred_fallthru
      _
    // Predicated region
    $region54: #{tpu_custom_call.1} parent=1 // pred_check
      _
    $region55: #{tpu_custom_call.1} parent=1 // pred_check_branch
      %881 = sbr.rel (0) target = $region57
    $region56: #{tpu_custom_call.1} parent=1 // pred_region
      %882 = dma.done [#allocation9], 256
    $region57: #{tpu_custom_call.1} parent=1 // pred_fallthru
      _
    // Predicated region
    $region58: #{tpu_custom_call.1} parent=1 // pred_check
      _
    $region59: #{tpu_custom_call.1} parent=1 // pred_check_branch
      %884 = sbr.rel (0) target = $region61
    $region60: #{tpu_custom_call.1} parent=1 // pred_region
      %885 = dma.done [#allocation12], 256
    $region61: #{tpu_custom_call.1} parent=1 // pred_fallthru
      _
    // Predicated region
    $region62: #{tpu_custom_call.1} parent=1 // pred_check
      _
    $region63: #{tpu_custom_call.1} parent=1 // pred_check_branch
      %887 = sbr.rel (0) target = $region65
    $region64: #{tpu_custom_call.1} parent=1 // pred_region
      %888 = dma.done [#allocation12], 256
    $region65: #{tpu_custom_call.1} parent=1 // pred_fallthru
      _
    // Predicated region
    $region66: #{tpu_custom_call.1} parent=1 // pred_check
      _
    $region67: #{tpu_custom_call.1} parent=1 // pred_check_branch
      %890 = sbr.rel (0) target = $region69
    $region68: #{tpu_custom_call.1} parent=1 // pred_region
      %891 = dma.done [#allocation15], 256
    $region69: #{tpu_custom_call.1} parent=1 // pred_fallthru
      _
    // Predicated region
    $region70: #{tpu_custom_call.1} parent=1 // pred_check
      _
    $region71: #{tpu_custom_call.1} parent=1 // pred_check_branch
      %893 = sbr.rel (0) target = $region73
    $region72: #{tpu_custom_call.1} parent=1 // pred_region
      %894 = dma.done [#allocation15], 128
    $region73: #{tpu_custom_call.1} parent=1 // pred_fallthru
      _
    %895 = vsyncpa [#allocation3], 1
    %896 = vsyncpa [#allocation6], 1
    %897 = vsyncpa [#allocation4], 1
    %898 = vsyncpa [#allocation9], 1
    %899 = vsyncpa [#allocation12], 1
    %900 = vsyncpa [#allocation15], 1

</llo_original>
